<compile_context>
chip_gen: v7x
topology: tpu7x:2x2x1
jax: 0.10.0
libtpu: 0.0.40
codegen_flags: <defaults>
</compile_context>

<pallas_src>
import functools
import math

import jax
import jax.numpy as jnp
from jax.experimental import pallas as pl
from jax.experimental.pallas import tpu as pltpu

EPS = 1e-5  # nn.LayerNorm default


# ------------------------------- kernel ------------------------------------

def _layernorm_1pass(x, gamma, beta):
    """LayerNorm with single-pass statistics (var = E[x^2] - mean^2)."""
    mean = jnp.mean(x, axis=-1, keepdims=True)
    mean_sq = jnp.mean(x * x, axis=-1, keepdims=True)
    var = mean_sq - mean * mean
    return (x - mean) * jax.lax.rsqrt(var + EPS) * gamma + beta


def fused_transformer_kernel(
        src_ids_ref, trg_ids_ref,            # SMEM int32 token ids
        enc_emb_ref, dec_emb_ref,            # (V, 1, E) embedding tables, VMEM
        src_bias_ref, trg_bias_ref,          # block-diagonal additive biases
        w_ee_ref,                            # (8, E, E): enc/dec wv, wk, wq*s, wo
        w_e4_ref,                            # (2, E, 4E): enc/dec ffn w1
        w_4e_ref,                            # (2, 4E, E): enc/dec ffn w2
        w_out_ref,                           # (E, Vpad)
        vec_e_ref,                           # (12, E):  enc/dec [bo,b2,g1,be1,g2,be2]
        vec_4e_ref,                          # (2, 4E):  enc/dec b1
        b_out_ref,                           # (1, Vpad)
        out_ref,                             # (N*S_trg, Vpad)
        enc_x_scr, dec_x_scr,                # VMEM scratch for gathered embeddings
        *, n_batch, s_src, s_trg, embed_size):
    E = embed_size
    r_src = n_batch * s_src
    r_trg = n_batch * s_trg

    # ---- in-kernel embedding gathers (ids from SMEM, tables in VMEM) ----
    for i in range(r_src):
        enc_x_scr[i:i + 1, :] = enc_emb_ref[src_ids_ref[i]]
    for i in range(r_trg):
        dec_x_scr[i:i + 1, :] = dec_emb_ref[trg_ids_ref[i]]
    enc_x = enc_x_scr[...]                   # (N*S_src, E)
    dec_x = dec_x_scr[...]                   # (N*S_trg, E)

    ve = vec_e_ref[...]                      # (12, E)
    v4 = vec_4e_ref[...]                     # (2, 4E)

    def block(kv, q, bias, wv, wk, wq_s, wo, w1, w2,
              bo, b1, b2, g1, be1, g2, be2):
        """One TransformerBlock (heads == 1) on flattened (N*S, E) slabs.

        bias is (rows_q, rows_kv) block-diagonal: cross-batch entries are -1e20,
        so a single flattened softmax is exactly the per-batch softmax."""
        V = jnp.dot(kv, wv, preferred_element_type=jnp.float32)
        K = jnp.dot(kv, wk, preferred_element_type=jnp.float32)
        Q = jnp.dot(q, wq_s, preferred_element_type=jnp.float32)
        # Q @ K^T without materializing a transpose; one matmul for all batches.
        scores = jax.lax.dot_general(
            Q, K, (((1,), (1,)), ((), ())),
            preferred_element_type=jnp.float32) + bias
        m = jnp.max(scores, axis=-1, keepdims=True)
        p = jnp.exp(scores - m)
        attn = p * pl.reciprocal(jnp.sum(p, axis=-1, keepdims=True), approx=True)
        ctx = jnp.dot(attn, V, preferred_element_type=jnp.float32)
        attn_out = jnp.dot(ctx, wo, preferred_element_type=jnp.float32) + bo
        x = _layernorm_1pass(attn_out + q, g1, be1)
        h = jnp.maximum(jnp.dot(x, w1, preferred_element_type=jnp.float32) + b1, 0.0)
        ff = jnp.dot(h, w2, preferred_element_type=jnp.float32) + b2
        return _layernorm_1pass(ff + x, g2, be2)

    # --- encoder block: value = key = query = enc_x ---
    enc_out = block(enc_x, enc_x, src_bias_ref[...],
                    w_ee_ref[0], w_ee_ref[1], w_ee_ref[2], w_ee_ref[3],
                    w_e4_ref[0], w_4e_ref[0],
                    ve[0:1], v4[0:1], ve[1:2], ve[2:3], ve[3:4], ve[4:5], ve[5:6])

    # --- decoder block: value = key = enc_out (stays in VMEM), query = dec_x ---
    dec_out = block(enc_out, dec_x, trg_bias_ref[...],
                    w_ee_ref[4], w_ee_ref[5], w_ee_ref[6], w_ee_ref[7],
                    w_e4_ref[1], w_4e_ref[1],
                    ve[6:7], v4[1:2], ve[7:8], ve[8:9], ve[9:10], ve[10:11], ve[11:12])

    # --- final projection into a lane-dense (multiple-of-128) output slab ---
    out_ref[...] = (jnp.dot(dec_out, w_out_ref[...],
                            preferred_element_type=jnp.float32)
                    + b_out_ref[...])


# --------------------------- parameter packing -------------------------------

def prepare_params(params, embed_size, vpad):
    """One-time packing (outside the per-call path): weight stacking, 1/sqrt(E)
    folded into wq, w_out / b_out lane-padded, embedding tables made 3-D for
    dynamic leading-axis indexing."""
    E = embed_size
    scale = jnp.float32(1.0 / math.sqrt(E))
    enc, dec = params['encoder'], params['decoder']
    vout = params['w_out'].shape[1]

    w_ee = jnp.stack([enc['wv'], enc['wk'], enc['wq'] * scale, enc['wo'],
                      dec['wv'], dec['wk'], dec['wq'] * scale, dec['wo']])
    w_e4 = jnp.stack([enc['w1'], dec['w1']])
    w_4e = jnp.stack([enc['w2'], dec['w2']])
    vec_e = jnp.concatenate(
        [enc['bo'], enc['b2'], enc['g1'], enc['be1'], enc['g2'], enc['be2'],
         dec['bo'], dec['b2'], dec['g1'], dec['be1'], dec['g2'], dec['be2']],
        axis=0)                                                    # (12, E)
    vec_4e = jnp.concatenate([enc['b1'], dec['b1']], axis=0)       # (2, 4E)
    w_out_p = jnp.zeros((E, vpad), jnp.float32).at[:, :vout].set(params['w_out'])
    b_out_p = jnp.zeros((1, vpad), jnp.float32).at[:, :vout].set(params['b_out'])

    return {
        'enc_emb': params['enc_emb'][:, None, :],   # (V_in, 1, E)
        'dec_emb': params['dec_emb'][:, None, :],   # (V_out, 1, E)
        'w_ee': w_ee, 'w_e4': w_e4, 'w_4e': w_4e, 'w_out': w_out_p,
        'vec_e': vec_e, 'vec_4e': vec_4e, 'b_out': b_out_p,
    }


def _block_diag_bias(mask, n, s_q, s_kv):
    """(n,1,s_q,s_kv) 0/1 mask -> (n*s_q, n*s_kv) additive bias with -1e20 for
    masked and cross-batch positions, 0 elsewhere."""
    diag = jnp.where(mask[:, 0] == 0, jnp.float32(-1e20), jnp.float32(0.0))
    eye = jnp.eye(n, dtype=bool)[:, None, :, None]                  # (n,1,n,1)
    full = jnp.where(eye, diag[:, :, None, :], jnp.float32(-1e20))  # (n,s_q,n,s_kv)
    return full.reshape(n * s_q, n * s_kv)


# ------------------------------- forward -------------------------------------

@functools.partial(jax.jit, static_argnums=(5,))
def simple_transformer_forward(packed, src, trg, src_mask, trg_mask, out_vocab):
    N, S_src = src.shape
    S_trg = trg.shape[1]
    E = packed['w_ee'].shape[-1]
    Vpad = packed['w_out'].shape[1]

    src_ids = src.reshape(-1).astype(jnp.int32)
    trg_ids = trg.reshape(-1).astype(jnp.int32)
    src_bias = _block_diag_bias(src_mask, N, S_src, S_src)
    trg_bias = _block_diag_bias(trg_mask, N, S_trg, S_src)

    kernel = functools.partial(fused_transformer_kernel, n_batch=N,
                               s_src=S_src, s_trg=S_trg, embed_size=E)

    smem = pl.BlockSpec(memory_space=pltpu.MemorySpace.SMEM)
    vmem = pl.BlockSpec(memory_space=pltpu.MemorySpace.VMEM)

    inputs = [src_ids, trg_ids,
              packed['enc_emb'], packed['dec_emb'],
              src_bias, trg_bias,
              packed['w_ee'], packed['w_e4'], packed['w_4e'], packed['w_out'],
              packed['vec_e'], packed['vec_4e'], packed['b_out']]

    out_flat = pl.pallas_call(
        kernel,
        out_shape=jax.ShapeDtypeStruct((N * S_trg, Vpad), jnp.float32),
        in_specs=[smem, smem] + [vmem] * (len(inputs) - 2),
        out_specs=vmem,
        scratch_shapes=[pltpu.VMEM((N * S_src, E), jnp.float32),
                        pltpu.VMEM((N * S_trg, E), jnp.float32)],
    )(*inputs)

    return out_flat.reshape(N, S_trg, Vpad)[:, :, :out_vocab]


# ----------------------------- parameter setup -------------------------------

def init_block_params(key, embed_size):
    E = embed_size
    ks = jax.random.split(key, 6)
    s = 1.0 / math.sqrt(E)
    return {
        'wv': jax.random.uniform(ks[0], (E, E), jnp.float32, -s, s),
        'wk': jax.random.uniform(ks[1], (E, E), jnp.float32, -s, s),
        'wq': jax.random.uniform(ks[2], (E, E), jnp.float32, -s, s),
        'wo': jax.random.uniform(ks[3], (E, E), jnp.float32, -s, s),
        'bo': jnp.zeros((1, E), jnp.float32),
        'w1': jax.random.uniform(ks[4], (E, 4 * E), jnp.float32, -s, s),
        'b1': jnp.zeros((1, 4 * E), jnp.float32),
        'w2': jax.random.uniform(ks[5], (4 * E, E), jnp.float32,
                                 -1.0 / math.sqrt(4 * E), 1.0 / math.sqrt(4 * E)),
        'b2': jnp.zeros((1, E), jnp.float32),
        'g1': jnp.ones((1, E), jnp.float32),
        'be1': jnp.zeros((1, E), jnp.float32),
        'g2': jnp.ones((1, E), jnp.float32),
        'be2': jnp.zeros((1, E), jnp.float32),
    }


# ----------------------------- pure-JAX reference ----------------------------

def _layernorm_ref(x, gamma, beta):
    mean = jnp.mean(x, axis=-1, keepdims=True)
    var = jnp.mean((x - mean) ** 2, axis=-1, keepdims=True)
    return (x - mean) * jax.lax.rsqrt(var + EPS) * gamma + beta


def _block_ref(value, key, query, mask, p, E):
    hi = jax.lax.Precision.HIGHEST
    V = jnp.dot(value, p['wv'], precision=hi)
    K = jnp.dot(key, p['wk'], precision=hi)
    Q = jnp.dot(query, p['wq'], precision=hi)
    energy = jnp.einsum('nqd,nkd->nqk', Q, K, precision=hi)
    energy = jnp.where(mask[:, 0] == 0, -1e20, energy)
    attn = jax.nn.softmax(energy / math.sqrt(E), axis=-1)
    ctx = jnp.einsum('nqk,nkd->nqd', attn, V, precision=hi)
    attn_out = jnp.dot(ctx, p['wo'], precision=hi) + p['bo']
    x = _layernorm_ref(attn_out + query, p['g1'], p['be1'])
    h = jax.nn.relu(jnp.dot(x, p['w1'], precision=hi) + p['b1'])
    ff = jnp.dot(h, p['w2'], precision=hi) + p['b2']
    return _layernorm_ref(ff + x, p['g2'], p['be2'])


def reference_forward(params, src, trg, src_mask, trg_mask, E):
    enc_embed = jnp.take(params['enc_emb'], src, axis=0)
    enc_out = _block_ref(enc_embed, enc_embed, enc_embed, src_mask,
                         params['encoder'], E)
    dec_embed = jnp.take(params['dec_emb'], trg, axis=0)
    dec_out = _block_ref(enc_out, enc_out, dec_embed, trg_mask,
                         params['decoder'], E)
    return jnp.dot(dec_out, params['w_out'],
                   precision=jax.lax.Precision.HIGHEST) + params['b_out']


# ---------------------------------- main -------------------------------------

if __name__ == "__main__":
    input_vocab_size = 50
    output_vocab_size = 40
    embed_size = 32
    heads = 1            # see NOTE above: PyTorch module only shape-checks for heads=1
    batch = 2
    src_len = 8
    trg_len = 8

    root = jax.random.PRNGKey(0)
    k_emb_e, k_emb_d, k_enc, k_dec, k_out, k_src, k_trg = jax.random.split(root, 7)

    params = {
        'enc_emb': jax.random.normal(k_emb_e, (input_vocab_size, embed_size),
                                     jnp.float32),
        'dec_emb': jax.random.normal(k_emb_d, (output_vocab_size, embed_size),
                                     jnp.float32),
        'encoder': init_block_params(k_enc, embed_size),
        'decoder': init_block_params(k_dec, embed_size),
        'w_out': jax.random.uniform(k_out, (embed_size, output_vocab_size),
                                    jnp.float32,
                                    -1.0 / math.sqrt(embed_size),
                                    1.0 / math.sqrt(embed_size)),
        'b_out': jnp.zeros((1, output_vocab_size), jnp.float32),
    }

    src = jax.random.randint(k_src, (batch, src_len), 0, input_vocab_size)
    trg = jax.random.randint(k_trg, (batch, trg_len), 0, output_vocab_size)

    src_mask = jnp.ones((batch, 1, src_len, src_len), jnp.float32)
    # causal-style mask for the decoder block (query=trg, key=enc source)
    trg_mask = jnp.tril(jnp.ones((trg_len, src_len), jnp.float32))[None, None]
    trg_mask = jnp.broadcast_to(trg_mask, (batch, 1, trg_len, src_len))

    # One-time packing, outside the jitted per-call path.
    vpad = pl.cdiv(output_vocab_size, 128) * 128
    packed = prepare_params(params, embed_size, vpad)
    packed = jax.tree_util.tree_map(jax.block_until_ready, packed)

    out = simple_transformer_forward(packed, src, trg, src_mask, trg_mask,
                                     output_vocab_size)
    out = jax.block_until_ready(out)

    ref = reference_forward(params, src, trg, src_mask, trg_mask, embed_size)
    assert out.shape == (batch, trg_len, output_vocab_size)
    assert jnp.allclose(out, ref, rtol=1e-3, atol=1e-3), "mismatch vs JAX reference"

    print("KERNEL_OK")
</pallas_src>

<mosaic_0001>
module attributes {stable_mosaic.version = 11 : i64} {
  func.func @fused_transformer_kernel(%arg0: memref<16xi32, #tpu.memory_space<smem>>, %arg1: memref<16xi32, #tpu.memory_space<smem>>, %arg2: memref<50x1x32xf32, #tpu.memory_space<vmem>>, %arg3: memref<40x1x32xf32, #tpu.memory_space<vmem>>, %arg4: memref<16x16xf32, #tpu.memory_space<vmem>>, %arg5: memref<16x16xf32, #tpu.memory_space<vmem>>, %arg6: memref<8x32x32xf32, #tpu.memory_space<vmem>>, %arg7: memref<2x32x128xf32, #tpu.memory_space<vmem>>, %arg8: memref<2x128x32xf32, #tpu.memory_space<vmem>>, %arg9: memref<32x128xf32, #tpu.memory_space<vmem>>, %arg10: memref<12x32xf32, #tpu.memory_space<vmem>>, %arg11: memref<2x128xf32, #tpu.memory_space<vmem>>, %arg12: memref<1x128xf32, #tpu.memory_space<vmem>>, %arg13: memref<16x128xf32, #tpu.memory_space<vmem>>, %arg14: memref<16x32xf32, #tpu.memory_space<vmem>>, %arg15: memref<16x32xf32, #tpu.memory_space<vmem>>) attributes {dimension_semantics = [], scalar_prefetch = 0 : i64, scratch_operands = 2 : i64, tpu.core_type = #tpu.core_type<tc>} {
    %c0 = arith.constant 0 : index
    %0 = memref.load %arg0[%c0] : memref<16xi32, #tpu.memory_space<smem>>
    %1 = arith.index_cast %0 : i32 to index
    %c0_0 = arith.constant 0 : index
    %c0_1 = arith.constant 0 : index
    %2 = vector.load %arg2[%1, %c0_0, %c0_1] : memref<50x1x32xf32, #tpu.memory_space<vmem>>, vector<1x1x32xf32>
    %3 = vector.shape_cast %2 : vector<1x1x32xf32> to vector<1x32xf32>
    %c0_2 = arith.constant 0 : index
    %c0_3 = arith.constant 0 : index
    %4 = vector.load %arg14[%c0_2, %c0_3] : memref<16x32xf32, #tpu.memory_space<vmem>>, vector<1x32xf32>
    tpu.vector_store %arg14[%c0_2, %c0_3], %3 {strides = array<i32>} : memref<16x32xf32, #tpu.memory_space<vmem>>, vector<1x32xf32>,
    %c1 = arith.constant 1 : index
    %5 = memref.load %arg0[%c1] : memref<16xi32, #tpu.memory_space<smem>>
    %6 = arith.index_cast %5 : i32 to index
    %c0_4 = arith.constant 0 : index
    %c0_5 = arith.constant 0 : index
    %7 = vector.load %arg2[%6, %c0_4, %c0_5] : memref<50x1x32xf32, #tpu.memory_space<vmem>>, vector<1x1x32xf32>
    %8 = vector.shape_cast %7 : vector<1x1x32xf32> to vector<1x32xf32>
    %c1_6 = arith.constant 1 : index
    %c0_7 = arith.constant 0 : index
    %9 = vector.load %arg14[%c1_6, %c0_7] : memref<16x32xf32, #tpu.memory_space<vmem>>, vector<1x32xf32>
    tpu.vector_store %arg14[%c1_6, %c0_7], %8 {strides = array<i32>} : memref<16x32xf32, #tpu.memory_space<vmem>>, vector<1x32xf32>,
    %c2 = arith.constant 2 : index
    %10 = memref.load %arg0[%c2] : memref<16xi32, #tpu.memory_space<smem>>
    %11 = arith.index_cast %10 : i32 to index
    %c0_8 = arith.constant 0 : index
    %c0_9 = arith.constant 0 : index
    %12 = vector.load %arg2[%11, %c0_8, %c0_9] : memref<50x1x32xf32, #tpu.memory_space<vmem>>, vector<1x1x32xf32>
    %13 = vector.shape_cast %12 : vector<1x1x32xf32> to vector<1x32xf32>
    %c2_10 = arith.constant 2 : index
    %c0_11 = arith.constant 0 : index
    %14 = vector.load %arg14[%c2_10, %c0_11] : memref<16x32xf32, #tpu.memory_space<vmem>>, vector<1x32xf32>
    tpu.vector_store %arg14[%c2_10, %c0_11], %13 {strides = array<i32>} : memref<16x32xf32, #tpu.memory_space<vmem>>, vector<1x32xf32>,
    %c3 = arith.constant 3 : index
    %15 = memref.load %arg0[%c3] : memref<16xi32, #tpu.memory_space<smem>>
    %16 = arith.index_cast %15 : i32 to index
    %c0_12 = arith.constant 0 : index
    %c0_13 = arith.constant 0 : index
    %17 = vector.load %arg2[%16, %c0_12, %c0_13] : memref<50x1x32xf32, #tpu.memory_space<vmem>>, vector<1x1x32xf32>
    %18 = vector.shape_cast %17 : vector<1x1x32xf32> to vector<1x32xf32>
    %c3_14 = arith.constant 3 : index
    %c0_15 = arith.constant 0 : index
    %19 = vector.load %arg14[%c3_14, %c0_15] : memref<16x32xf32, #tpu.memory_space<vmem>>, vector<1x32xf32>
    tpu.vector_store %arg14[%c3_14, %c0_15], %18 {strides = array<i32>} : memref<16x32xf32, #tpu.memory_space<vmem>>, vector<1x32xf32>,
    %c4 = arith.constant 4 : index
    %20 = memref.load %arg0[%c4] : memref<16xi32, #tpu.memory_space<smem>>
    %21 = arith.index_cast %20 : i32 to index
    %c0_16 = arith.constant 0 : index
    %c0_17 = arith.constant 0 : index
    %22 = vector.load %arg2[%21, %c0_16, %c0_17] : memref<50x1x32xf32, #tpu.memory_space<vmem>>, vector<1x1x32xf32>
    %23 = vector.shape_cast %22 : vector<1x1x32xf32> to vector<1x32xf32>
    %c4_18 = arith.constant 4 : index
    %c0_19 = arith.constant 0 : index
    %24 = vector.load %arg14[%c4_18, %c0_19] : memref<16x32xf32, #tpu.memory_space<vmem>>, vector<1x32xf32>
    tpu.vector_store %arg14[%c4_18, %c0_19], %23 {strides = array<i32>} : memref<16x32xf32, #tpu.memory_space<vmem>>, vector<1x32xf32>,
    %c5 = arith.constant 5 : index
    %25 = memref.load %arg0[%c5] : memref<16xi32, #tpu.memory_space<smem>>
    %26 = arith.index_cast %25 : i32 to index
    %c0_20 = arith.constant 0 : index
    %c0_21 = arith.constant 0 : index
    %27 = vector.load %arg2[%26, %c0_20, %c0_21] : memref<50x1x32xf32, #tpu.memory_space<vmem>>, vector<1x1x32xf32>
    %28 = vector.shape_cast %27 : vector<1x1x32xf32> to vector<1x32xf32>
    %c5_22 = arith.constant 5 : index
    %c0_23 = arith.constant 0 : index
    %29 = vector.load %arg14[%c5_22, %c0_23] : memref<16x32xf32, #tpu.memory_space<vmem>>, vector<1x32xf32>
    tpu.vector_store %arg14[%c5_22, %c0_23], %28 {strides = array<i32>} : memref<16x32xf32, #tpu.memory_space<vmem>>, vector<1x32xf32>,
    %c6 = arith.constant 6 : index
    %30 = memref.load %arg0[%c6] : memref<16xi32, #tpu.memory_space<smem>>
    %31 = arith.index_cast %30 : i32 to index
    %c0_24 = arith.constant 0 : index
    %c0_25 = arith.constant 0 : index
    %32 = vector.load %arg2[%31, %c0_24, %c0_25] : memref<50x1x32xf32, #tpu.memory_space<vmem>>, vector<1x1x32xf32>
    %33 = vector.shape_cast %32 : vector<1x1x32xf32> to vector<1x32xf32>
    %c6_26 = arith.constant 6 : index
    %c0_27 = arith.constant 0 : index
    %34 = vector.load %arg14[%c6_26, %c0_27] : memref<16x32xf32, #tpu.memory_space<vmem>>, vector<1x32xf32>
    tpu.vector_store %arg14[%c6_26, %c0_27], %33 {strides = array<i32>} : memref<16x32xf32, #tpu.memory_space<vmem>>, vector<1x32xf32>,
    %c7 = arith.constant 7 : index
    %35 = memref.load %arg0[%c7] : memref<16xi32, #tpu.memory_space<smem>>
    %36 = arith.index_cast %35 : i32 to index
    %c0_28 = arith.constant 0 : index
    %c0_29 = arith.constant 0 : index
    %37 = vector.load %arg2[%36, %c0_28, %c0_29] : memref<50x1x32xf32, #tpu.memory_space<vmem>>, vector<1x1x32xf32>
    %38 = vector.shape_cast %37 : vector<1x1x32xf32> to vector<1x32xf32>
    %c7_30 = arith.constant 7 : index
    %c0_31 = arith.constant 0 : index
    %39 = vector.load %arg14[%c7_30, %c0_31] : memref<16x32xf32, #tpu.memory_space<vmem>>, vector<1x32xf32>
    tpu.vector_store %arg14[%c7_30, %c0_31], %38 {strides = array<i32>} : memref<16x32xf32, #tpu.memory_space<vmem>>, vector<1x32xf32>,
    %c8 = arith.constant 8 : index
    %40 = memref.load %arg0[%c8] : memref<16xi32, #tpu.memory_space<smem>>
    %41 = arith.index_cast %40 : i32 to index
    %c0_32 = arith.constant 0 : index
    %c0_33 = arith.constant 0 : index
    %42 = vector.load %arg2[%41, %c0_32, %c0_33] : memref<50x1x32xf32, #tpu.memory_space<vmem>>, vector<1x1x32xf32>
    %43 = vector.shape_cast %42 : vector<1x1x32xf32> to vector<1x32xf32>
    %c8_34 = arith.constant 8 : index
    %c0_35 = arith.constant 0 : index
    %44 = vector.load %arg14[%c8_34, %c0_35] : memref<16x32xf32, #tpu.memory_space<vmem>>, vector<1x32xf32>
    tpu.vector_store %arg14[%c8_34, %c0_35], %43 {strides = array<i32>} : memref<16x32xf32, #tpu.memory_space<vmem>>, vector<1x32xf32>,
    %c9 = arith.constant 9 : index
    %45 = memref.load %arg0[%c9] : memref<16xi32, #tpu.memory_space<smem>>
    %46 = arith.index_cast %45 : i32 to index
    %c0_36 = arith.constant 0 : index
    %c0_37 = arith.constant 0 : index
    %47 = vector.load %arg2[%46, %c0_36, %c0_37] : memref<50x1x32xf32, #tpu.memory_space<vmem>>, vector<1x1x32xf32>
    %48 = vector.shape_cast %47 : vector<1x1x32xf32> to vector<1x32xf32>
    %c9_38 = arith.constant 9 : index
    %c0_39 = arith.constant 0 : index
    %49 = vector.load %arg14[%c9_38, %c0_39] : memref<16x32xf32, #tpu.memory_space<vmem>>, vector<1x32xf32>
    tpu.vector_store %arg14[%c9_38, %c0_39], %48 {strides = array<i32>} : memref<16x32xf32, #tpu.memory_space<vmem>>, vector<1x32xf32>,
    %c10 = arith.constant 10 : index
    %50 = memref.load %arg0[%c10] : memref<16xi32, #tpu.memory_space<smem>>
    %51 = arith.index_cast %50 : i32 to index
    %c0_40 = arith.constant 0 : index
    %c0_41 = arith.constant 0 : index
    %52 = vector.load %arg2[%51, %c0_40, %c0_41] : memref<50x1x32xf32, #tpu.memory_space<vmem>>, vector<1x1x32xf32>
    %53 = vector.shape_cast %52 : vector<1x1x32xf32> to vector<1x32xf32>
    %c10_42 = arith.constant 10 : index
    %c0_43 = arith.constant 0 : index
    %54 = vector.load %arg14[%c10_42, %c0_43] : memref<16x32xf32, #tpu.memory_space<vmem>>, vector<1x32xf32>
    tpu.vector_store %arg14[%c10_42, %c0_43], %53 {strides = array<i32>} : memref<16x32xf32, #tpu.memory_space<vmem>>, vector<1x32xf32>,
    %c11 = arith.constant 11 : index
    %55 = memref.load %arg0[%c11] : memref<16xi32, #tpu.memory_space<smem>>
    %56 = arith.index_cast %55 : i32 to index
    %c0_44 = arith.constant 0 : index
    %c0_45 = arith.constant 0 : index
    %57 = vector.load %arg2[%56, %c0_44, %c0_45] : memref<50x1x32xf32, #tpu.memory_space<vmem>>, vector<1x1x32xf32>
    %58 = vector.shape_cast %57 : vector<1x1x32xf32> to vector<1x32xf32>
    %c11_46 = arith.constant 11 : index
    %c0_47 = arith.constant 0 : index
    %59 = vector.load %arg14[%c11_46, %c0_47] : memref<16x32xf32, #tpu.memory_space<vmem>>, vector<1x32xf32>
    tpu.vector_store %arg14[%c11_46, %c0_47], %58 {strides = array<i32>} : memref<16x32xf32, #tpu.memory_space<vmem>>, vector<1x32xf32>,
    %c12 = arith.constant 12 : index
    %60 = memref.load %arg0[%c12] : memref<16xi32, #tpu.memory_space<smem>>
    %61 = arith.index_cast %60 : i32 to index
    %c0_48 = arith.constant 0 : index
    %c0_49 = arith.constant 0 : index
    %62 = vector.load %arg2[%61, %c0_48, %c0_49] : memref<50x1x32xf32, #tpu.memory_space<vmem>>, vector<1x1x32xf32>
    %63 = vector.shape_cast %62 : vector<1x1x32xf32> to vector<1x32xf32>
    %c12_50 = arith.constant 12 : index
    %c0_51 = arith.constant 0 : index
    %64 = vector.load %arg14[%c12_50, %c0_51] : memref<16x32xf32, #tpu.memory_space<vmem>>, vector<1x32xf32>
    tpu.vector_store %arg14[%c12_50, %c0_51], %63 {strides = array<i32>} : memref<16x32xf32, #tpu.memory_space<vmem>>, vector<1x32xf32>,
    %c13 = arith.constant 13 : index
    %65 = memref.load %arg0[%c13] : memref<16xi32, #tpu.memory_space<smem>>
    %66 = arith.index_cast %65 : i32 to index
    %c0_52 = arith.constant 0 : index
    %c0_53 = arith.constant 0 : index
    %67 = vector.load %arg2[%66, %c0_52, %c0_53] : memref<50x1x32xf32, #tpu.memory_space<vmem>>, vector<1x1x32xf32>
    %68 = vector.shape_cast %67 : vector<1x1x32xf32> to vector<1x32xf32>
    %c13_54 = arith.constant 13 : index
    %c0_55 = arith.constant 0 : index
    %69 = vector.load %arg14[%c13_54, %c0_55] : memref<16x32xf32, #tpu.memory_space<vmem>>, vector<1x32xf32>
    tpu.vector_store %arg14[%c13_54, %c0_55], %68 {strides = array<i32>} : memref<16x32xf32, #tpu.memory_space<vmem>>, vector<1x32xf32>,
    %c14 = arith.constant 14 : index
    %70 = memref.load %arg0[%c14] : memref<16xi32, #tpu.memory_space<smem>>
    %71 = arith.index_cast %70 : i32 to index
    %c0_56 = arith.constant 0 : index
    %c0_57 = arith.constant 0 : index
    %72 = vector.load %arg2[%71, %c0_56, %c0_57] : memref<50x1x32xf32, #tpu.memory_space<vmem>>, vector<1x1x32xf32>
    %73 = vector.shape_cast %72 : vector<1x1x32xf32> to vector<1x32xf32>
    %c14_58 = arith.constant 14 : index
    %c0_59 = arith.constant 0 : index
    %74 = vector.load %arg14[%c14_58, %c0_59] : memref<16x32xf32, #tpu.memory_space<vmem>>, vector<1x32xf32>
    tpu.vector_store %arg14[%c14_58, %c0_59], %73 {strides = array<i32>} : memref<16x32xf32, #tpu.memory_space<vmem>>, vector<1x32xf32>,
    %c15 = arith.constant 15 : index
    %75 = memref.load %arg0[%c15] : memref<16xi32, #tpu.memory_space<smem>>
    %76 = arith.index_cast %75 : i32 to index
    %c0_60 = arith.constant 0 : index
    %c0_61 = arith.constant 0 : index
    %77 = vector.load %arg2[%76, %c0_60, %c0_61] : memref<50x1x32xf32, #tpu.memory_space<vmem>>, vector<1x1x32xf32>
    %78 = vector.shape_cast %77 : vector<1x1x32xf32> to vector<1x32xf32>
    %c15_62 = arith.constant 15 : index
    %c0_63 = arith.constant 0 : index
    %79 = vector.load %arg14[%c15_62, %c0_63] : memref<16x32xf32, #tpu.memory_space<vmem>>, vector<1x32xf32>
    tpu.vector_store %arg14[%c15_62, %c0_63], %78 {strides = array<i32>} : memref<16x32xf32, #tpu.memory_space<vmem>>, vector<1x32xf32>,
    %c0_64 = arith.constant 0 : index
    %80 = memref.load %arg1[%c0_64] : memref<16xi32, #tpu.memory_space<smem>>
    %81 = arith.index_cast %80 : i32 to index
    %c0_65 = arith.constant 0 : index
    %c0_66 = arith.constant 0 : index
    %82 = vector.load %arg3[%81, %c0_65, %c0_66] : memref<40x1x32xf32, #tpu.memory_space<vmem>>, vector<1x1x32xf32>
    %83 = vector.shape_cast %82 : vector<1x1x32xf32> to vector<1x32xf32>
    %c0_67 = arith.constant 0 : index
    %c0_68 = arith.constant 0 : index
    %84 = vector.load %arg15[%c0_67, %c0_68] : memref<16x32xf32, #tpu.memory_space<vmem>>, vector<1x32xf32>
    tpu.vector_store %arg15[%c0_67, %c0_68], %83 {strides = array<i32>} : memref<16x32xf32, #tpu.memory_space<vmem>>, vector<1x32xf32>,
    %c1_69 = arith.constant 1 : index
    %85 = memref.load %arg1[%c1_69] : memref<16xi32, #tpu.memory_space<smem>>
    %86 = arith.index_cast %85 : i32 to index
    %c0_70 = arith.constant 0 : index
    %c0_71 = arith.constant 0 : index
    %87 = vector.load %arg3[%86, %c0_70, %c0_71] : memref<40x1x32xf32, #tpu.memory_space<vmem>>, vector<1x1x32xf32>
    %88 = vector.shape_cast %87 : vector<1x1x32xf32> to vector<1x32xf32>
    %c1_72 = arith.constant 1 : index
    %c0_73 = arith.constant 0 : index
    %89 = vector.load %arg15[%c1_72, %c0_73] : memref<16x32xf32, #tpu.memory_space<vmem>>, vector<1x32xf32>
    tpu.vector_store %arg15[%c1_72, %c0_73], %88 {strides = array<i32>} : memref<16x32xf32, #tpu.memory_space<vmem>>, vector<1x32xf32>,
    %c2_74 = arith.constant 2 : index
    %90 = memref.load %arg1[%c2_74] : memref<16xi32, #tpu.memory_space<smem>>
    %91 = arith.index_cast %90 : i32 to index
    %c0_75 = arith.constant 0 : index
    %c0_76 = arith.constant 0 : index
    %92 = vector.load %arg3[%91, %c0_75, %c0_76] : memref<40x1x32xf32, #tpu.memory_space<vmem>>, vector<1x1x32xf32>
    %93 = vector.shape_cast %92 : vector<1x1x32xf32> to vector<1x32xf32>
    %c2_77 = arith.constant 2 : index
    %c0_78 = arith.constant 0 : index
    %94 = vector.load %arg15[%c2_77, %c0_78] : memref<16x32xf32, #tpu.memory_space<vmem>>, vector<1x32xf32>
    tpu.vector_store %arg15[%c2_77, %c0_78], %93 {strides = array<i32>} : memref<16x32xf32, #tpu.memory_space<vmem>>, vector<1x32xf32>,
    %c3_79 = arith.constant 3 : index
    %95 = memref.load %arg1[%c3_79] : memref<16xi32, #tpu.memory_space<smem>>
    %96 = arith.index_cast %95 : i32 to index
    %c0_80 = arith.constant 0 : index
    %c0_81 = arith.constant 0 : index
    %97 = vector.load %arg3[%96, %c0_80, %c0_81] : memref<40x1x32xf32, #tpu.memory_space<vmem>>, vector<1x1x32xf32>
    %98 = vector.shape_cast %97 : vector<1x1x32xf32> to vector<1x32xf32>
    %c3_82 = arith.constant 3 : index
    %c0_83 = arith.constant 0 : index
    %99 = vector.load %arg15[%c3_82, %c0_83] : memref<16x32xf32, #tpu.memory_space<vmem>>, vector<1x32xf32>
    tpu.vector_store %arg15[%c3_82, %c0_83], %98 {strides = array<i32>} : memref<16x32xf32, #tpu.memory_space<vmem>>, vector<1x32xf32>,
    %c4_84 = arith.constant 4 : index
    %100 = memref.load %arg1[%c4_84] : memref<16xi32, #tpu.memory_space<smem>>
    %101 = arith.index_cast %100 : i32 to index
    %c0_85 = arith.constant 0 : index
    %c0_86 = arith.constant 0 : index
    %102 = vector.load %arg3[%101, %c0_85, %c0_86] : memref<40x1x32xf32, #tpu.memory_space<vmem>>, vector<1x1x32xf32>
    %103 = vector.shape_cast %102 : vector<1x1x32xf32> to vector<1x32xf32>
    %c4_87 = arith.constant 4 : index
    %c0_88 = arith.constant 0 : index
    %104 = vector.load %arg15[%c4_87, %c0_88] : memref<16x32xf32, #tpu.memory_space<vmem>>, vector<1x32xf32>
    tpu.vector_store %arg15[%c4_87, %c0_88], %103 {strides = array<i32>} : memref<16x32xf32, #tpu.memory_space<vmem>>, vector<1x32xf32>,
    %c5_89 = arith.constant 5 : index
    %105 = memref.load %arg1[%c5_89] : memref<16xi32, #tpu.memory_space<smem>>
    %106 = arith.index_cast %105 : i32 to index
    %c0_90 = arith.constant 0 : index
    %c0_91 = arith.constant 0 : index
    %107 = vector.load %arg3[%106, %c0_90, %c0_91] : memref<40x1x32xf32, #tpu.memory_space<vmem>>, vector<1x1x32xf32>
    %108 = vector.shape_cast %107 : vector<1x1x32xf32> to vector<1x32xf32>
    %c5_92 = arith.constant 5 : index
    %c0_93 = arith.constant 0 : index
    %109 = vector.load %arg15[%c5_92, %c0_93] : memref<16x32xf32, #tpu.memory_space<vmem>>, vector<1x32xf32>
    tpu.vector_store %arg15[%c5_92, %c0_93], %108 {strides = array<i32>} : memref<16x32xf32, #tpu.memory_space<vmem>>, vector<1x32xf32>,
    %c6_94 = arith.constant 6 : index
    %110 = memref.load %arg1[%c6_94] : memref<16xi32, #tpu.memory_space<smem>>
    %111 = arith.index_cast %110 : i32 to index
    %c0_95 = arith.constant 0 : index
    %c0_96 = arith.constant 0 : index
    %112 = vector.load %arg3[%111, %c0_95, %c0_96] : memref<40x1x32xf32, #tpu.memory_space<vmem>>, vector<1x1x32xf32>
    %113 = vector.shape_cast %112 : vector<1x1x32xf32> to vector<1x32xf32>
    %c6_97 = arith.constant 6 : index
    %c0_98 = arith.constant 0 : index
    %114 = vector.load %arg15[%c6_97, %c0_98] : memref<16x32xf32, #tpu.memory_space<vmem>>, vector<1x32xf32>
    tpu.vector_store %arg15[%c6_97, %c0_98], %113 {strides = array<i32>} : memref<16x32xf32, #tpu.memory_space<vmem>>, vector<1x32xf32>,
    %c7_99 = arith.constant 7 : index
    %115 = memref.load %arg1[%c7_99] : memref<16xi32, #tpu.memory_space<smem>>
    %116 = arith.index_cast %115 : i32 to index
    %c0_100 = arith.constant 0 : index
    %c0_101 = arith.constant 0 : index
    %117 = vector.load %arg3[%116, %c0_100, %c0_101] : memref<40x1x32xf32, #tpu.memory_space<vmem>>, vector<1x1x32xf32>
    %118 = vector.shape_cast %117 : vector<1x1x32xf32> to vector<1x32xf32>
    %c7_102 = arith.constant 7 : index
    %c0_103 = arith.constant 0 : index
    %119 = vector.load %arg15[%c7_102, %c0_103] : memref<16x32xf32, #tpu.memory_space<vmem>>, vector<1x32xf32>
    tpu.vector_store %arg15[%c7_102, %c0_103], %118 {strides = array<i32>} : memref<16x32xf32, #tpu.memory_space<vmem>>, vector<1x32xf32>,
    %c8_104 = arith.constant 8 : index
    %120 = memref.load %arg1[%c8_104] : memref<16xi32, #tpu.memory_space<smem>>
    %121 = arith.index_cast %120 : i32 to index
    %c0_105 = arith.constant 0 : index
    %c0_106 = arith.constant 0 : index
    %122 = vector.load %arg3[%121, %c0_105, %c0_106] : memref<40x1x32xf32, #tpu.memory_space<vmem>>, vector<1x1x32xf32>
    %123 = vector.shape_cast %122 : vector<1x1x32xf32> to vector<1x32xf32>
    %c8_107 = arith.constant 8 : index
    %c0_108 = arith.constant 0 : index
    %124 = vector.load %arg15[%c8_107, %c0_108] : memref<16x32xf32, #tpu.memory_space<vmem>>, vector<1x32xf32>
    tpu.vector_store %arg15[%c8_107, %c0_108], %123 {strides = array<i32>} : memref<16x32xf32, #tpu.memory_space<vmem>>, vector<1x32xf32>,
    %c9_109 = arith.constant 9 : index
    %125 = memref.load %arg1[%c9_109] : memref<16xi32, #tpu.memory_space<smem>>
    %126 = arith.index_cast %125 : i32 to index
    %c0_110 = arith.constant 0 : index
    %c0_111 = arith.constant 0 : index
    %127 = vector.load %arg3[%126, %c0_110, %c0_111] : memref<40x1x32xf32, #tpu.memory_space<vmem>>, vector<1x1x32xf32>
    %128 = vector.shape_cast %127 : vector<1x1x32xf32> to vector<1x32xf32>
    %c9_112 = arith.constant 9 : index
    %c0_113 = arith.constant 0 : index
    %129 = vector.load %arg15[%c9_112, %c0_113] : memref<16x32xf32, #tpu.memory_space<vmem>>, vector<1x32xf32>
    tpu.vector_store %arg15[%c9_112, %c0_113], %128 {strides = array<i32>} : memref<16x32xf32, #tpu.memory_space<vmem>>, vector<1x32xf32>,
    %c10_114 = arith.constant 10 : index
    %130 = memref.load %arg1[%c10_114] : memref<16xi32, #tpu.memory_space<smem>>
    %131 = arith.index_cast %130 : i32 to index
    %c0_115 = arith.constant 0 : index
    %c0_116 = arith.constant 0 : index
    %132 = vector.load %arg3[%131, %c0_115, %c0_116] : memref<40x1x32xf32, #tpu.memory_space<vmem>>, vector<1x1x32xf32>
    %133 = vector.shape_cast %132 : vector<1x1x32xf32> to vector<1x32xf32>
    %c10_117 = arith.constant 10 : index
    %c0_118 = arith.constant 0 : index
    %134 = vector.load %arg15[%c10_117, %c0_118] : memref<16x32xf32, #tpu.memory_space<vmem>>, vector<1x32xf32>
    tpu.vector_store %arg15[%c10_117, %c0_118], %133 {strides = array<i32>} : memref<16x32xf32, #tpu.memory_space<vmem>>, vector<1x32xf32>,
    %c11_119 = arith.constant 11 : index
    %135 = memref.load %arg1[%c11_119] : memref<16xi32, #tpu.memory_space<smem>>
    %136 = arith.index_cast %135 : i32 to index
    %c0_120 = arith.constant 0 : index
    %c0_121 = arith.constant 0 : index
    %137 = vector.load %arg3[%136, %c0_120, %c0_121] : memref<40x1x32xf32, #tpu.memory_space<vmem>>, vector<1x1x32xf32>
    %138 = vector.shape_cast %137 : vector<1x1x32xf32> to vector<1x32xf32>
    %c11_122 = arith.constant 11 : index
    %c0_123 = arith.constant 0 : index
    %139 = vector.load %arg15[%c11_122, %c0_123] : memref<16x32xf32, #tpu.memory_space<vmem>>, vector<1x32xf32>
    tpu.vector_store %arg15[%c11_122, %c0_123], %138 {strides = array<i32>} : memref<16x32xf32, #tpu.memory_space<vmem>>, vector<1x32xf32>,
    %c12_124 = arith.constant 12 : index
    %140 = memref.load %arg1[%c12_124] : memref<16xi32, #tpu.memory_space<smem>>
    %141 = arith.index_cast %140 : i32 to index
    %c0_125 = arith.constant 0 : index
    %c0_126 = arith.constant 0 : index
    %142 = vector.load %arg3[%141, %c0_125, %c0_126] : memref<40x1x32xf32, #tpu.memory_space<vmem>>, vector<1x1x32xf32>
    %143 = vector.shape_cast %142 : vector<1x1x32xf32> to vector<1x32xf32>
    %c12_127 = arith.constant 12 : index
    %c0_128 = arith.constant 0 : index
    %144 = vector.load %arg15[%c12_127, %c0_128] : memref<16x32xf32, #tpu.memory_space<vmem>>, vector<1x32xf32>
    tpu.vector_store %arg15[%c12_127, %c0_128], %143 {strides = array<i32>} : memref<16x32xf32, #tpu.memory_space<vmem>>, vector<1x32xf32>,
    %c13_129 = arith.constant 13 : index
    %145 = memref.load %arg1[%c13_129] : memref<16xi32, #tpu.memory_space<smem>>
    %146 = arith.index_cast %145 : i32 to index
    %c0_130 = arith.constant 0 : index
    %c0_131 = arith.constant 0 : index
    %147 = vector.load %arg3[%146, %c0_130, %c0_131] : memref<40x1x32xf32, #tpu.memory_space<vmem>>, vector<1x1x32xf32>
    %148 = vector.shape_cast %147 : vector<1x1x32xf32> to vector<1x32xf32>
    %c13_132 = arith.constant 13 : index
    %c0_133 = arith.constant 0 : index
    %149 = vector.load %arg15[%c13_132, %c0_133] : memref<16x32xf32, #tpu.memory_space<vmem>>, vector<1x32xf32>
    tpu.vector_store %arg15[%c13_132, %c0_133], %148 {strides = array<i32>} : memref<16x32xf32, #tpu.memory_space<vmem>>, vector<1x32xf32>,
    %c14_134 = arith.constant 14 : index
    %150 = memref.load %arg1[%c14_134] : memref<16xi32, #tpu.memory_space<smem>>
    %151 = arith.index_cast %150 : i32 to index
    %c0_135 = arith.constant 0 : index
    %c0_136 = arith.constant 0 : index
    %152 = vector.load %arg3[%151, %c0_135, %c0_136] : memref<40x1x32xf32, #tpu.memory_space<vmem>>, vector<1x1x32xf32>
    %153 = vector.shape_cast %152 : vector<1x1x32xf32> to vector<1x32xf32>
    %c14_137 = arith.constant 14 : index
    %c0_138 = arith.constant 0 : index
    %154 = vector.load %arg15[%c14_137, %c0_138] : memref<16x32xf32, #tpu.memory_space<vmem>>, vector<1x32xf32>
    tpu.vector_store %arg15[%c14_137, %c0_138], %153 {strides = array<i32>} : memref<16x32xf32, #tpu.memory_space<vmem>>, vector<1x32xf32>,
    %c15_139 = arith.constant 15 : index
    %155 = memref.load %arg1[%c15_139] : memref<16xi32, #tpu.memory_space<smem>>
    %156 = arith.index_cast %155 : i32 to index
    %c0_140 = arith.constant 0 : index
    %c0_141 = arith.constant 0 : index
    %157 = vector.load %arg3[%156, %c0_140, %c0_141] : memref<40x1x32xf32, #tpu.memory_space<vmem>>, vector<1x1x32xf32>
    %158 = vector.shape_cast %157 : vector<1x1x32xf32> to vector<1x32xf32>
    %c15_142 = arith.constant 15 : index
    %c0_143 = arith.constant 0 : index
    %159 = vector.load %arg15[%c15_142, %c0_143] : memref<16x32xf32, #tpu.memory_space<vmem>>, vector<1x32xf32>
    tpu.vector_store %arg15[%c15_142, %c0_143], %158 {strides = array<i32>} : memref<16x32xf32, #tpu.memory_space<vmem>>, vector<1x32xf32>,
    %c0_144 = arith.constant 0 : index
    %c0_145 = arith.constant 0 : index
    %160 = vector.load %arg14[%c0_144, %c0_145] : memref<16x32xf32, #tpu.memory_space<vmem>>, vector<16x32xf32>
    %c0_146 = arith.constant 0 : index
    %c0_147 = arith.constant 0 : index
    %161 = vector.load %arg15[%c0_146, %c0_147] : memref<16x32xf32, #tpu.memory_space<vmem>>, vector<16x32xf32>
    %c0_148 = arith.constant 0 : index
    %c0_149 = arith.constant 0 : index
    %162 = vector.load %arg10[%c0_148, %c0_149] : memref<12x32xf32, #tpu.memory_space<vmem>>, vector<12x32xf32>
    %c0_150 = arith.constant 0 : index
    %c0_151 = arith.constant 0 : index
    %163 = vector.load %arg11[%c0_150, %c0_151] : memref<2x128xf32, #tpu.memory_space<vmem>>, vector<2x128xf32>
    %c0_152 = arith.constant 0 : index
    %c0_153 = arith.constant 0 : index
    %164 = vector.load %arg4[%c0_152, %c0_153] : memref<16x16xf32, #tpu.memory_space<vmem>>, vector<16x16xf32>
    %c0_154 = arith.constant 0 : index
    %c0_155 = arith.constant 0 : index
    %c0_156 = arith.constant 0 : index
    %165 = vector.load %arg6[%c0_154, %c0_155, %c0_156] : memref<8x32x32xf32, #tpu.memory_space<vmem>>, vector<1x32x32xf32>
    %166 = vector.shape_cast %165 : vector<1x32x32xf32> to vector<32x32xf32>
    %c1_157 = arith.constant 1 : index
    %c0_158 = arith.constant 0 : index
    %c0_159 = arith.constant 0 : index
    %167 = vector.load %arg6[%c1_157, %c0_158, %c0_159] : memref<8x32x32xf32, #tpu.memory_space<vmem>>, vector<1x32x32xf32>
    %168 = vector.shape_cast %167 : vector<1x32x32xf32> to vector<32x32xf32>
    %c2_160 = arith.constant 2 : index
    %c0_161 = arith.constant 0 : index
    %c0_162 = arith.constant 0 : index
    %169 = vector.load %arg6[%c2_160, %c0_161, %c0_162] : memref<8x32x32xf32, #tpu.memory_space<vmem>>, vector<1x32x32xf32>
    %170 = vector.shape_cast %169 : vector<1x32x32xf32> to vector<32x32xf32>
    %c3_163 = arith.constant 3 : index
    %c0_164 = arith.constant 0 : index
    %c0_165 = arith.constant 0 : index
    %171 = vector.load %arg6[%c3_163, %c0_164, %c0_165] : memref<8x32x32xf32, #tpu.memory_space<vmem>>, vector<1x32x32xf32>
    %172 = vector.shape_cast %171 : vector<1x32x32xf32> to vector<32x32xf32>
    %c0_166 = arith.constant 0 : index
    %c0_167 = arith.constant 0 : index
    %c0_168 = arith.constant 0 : index
    %173 = vector.load %arg7[%c0_166, %c0_167, %c0_168] : memref<2x32x128xf32, #tpu.memory_space<vmem>>, vector<1x32x128xf32>
    %174 = vector.shape_cast %173 : vector<1x32x128xf32> to vector<32x128xf32>
    %c0_169 = arith.constant 0 : index
    %c0_170 = arith.constant 0 : index
    %c0_171 = arith.constant 0 : index
    %175 = vector.load %arg8[%c0_169, %c0_170, %c0_171] : memref<2x128x32xf32, #tpu.memory_space<vmem>>, vector<1x128x32xf32>
    %176 = vector.shape_cast %175 : vector<1x128x32xf32> to vector<128x32xf32>
    %177 = vector.extract_strided_slice %162 {offsets = [0, 0], sizes = [1, 32], strides = [1, 1]} : vector<12x32xf32> to vector<1x32xf32>
    %178 = vector.extract_strided_slice %163 {offsets = [0, 0], sizes = [1, 128], strides = [1, 1]} : vector<2x128xf32> to vector<1x128xf32>
    %179 = vector.extract_strided_slice %162 {offsets = [1, 0], sizes = [1, 32], strides = [1, 1]} : vector<12x32xf32> to vector<1x32xf32>
    %180 = vector.extract_strided_slice %162 {offsets = [2, 0], sizes = [1, 32], strides = [1, 1]} : vector<12x32xf32> to vector<1x32xf32>
    %181 = vector.extract_strided_slice %162 {offsets = [3, 0], sizes = [1, 32], strides = [1, 1]} : vector<12x32xf32> to vector<1x32xf32>
    %182 = vector.extract_strided_slice %162 {offsets = [4, 0], sizes = [1, 32], strides = [1, 1]} : vector<12x32xf32> to vector<1x32xf32>
    %183 = vector.extract_strided_slice %162 {offsets = [5, 0], sizes = [1, 32], strides = [1, 1]} : vector<12x32xf32> to vector<1x32xf32>
    %cst = arith.constant dense<0.000000e+00> : vector<16x32xf32>
    %184 = tpu.matmul %160, %166, %cst {dimension_numbers = #tpu.dot_dimension_numbers<[1], [0], [0], [1], [0, 0, 1, 1], [], []>} : vector<16x32xf32>, vector<32x32xf32>, vector<16x32xf32> -> vector<16x32xf32>
    %cst_172 = arith.constant dense<0.000000e+00> : vector<16x32xf32>
    %185 = tpu.matmul %160, %168, %cst_172 {dimension_numbers = #tpu.dot_dimension_numbers<[1], [0], [0], [1], [0, 0, 1, 1], [], []>} : vector<16x32xf32>, vector<32x32xf32>, vector<16x32xf32> -> vector<16x32xf32>
    %cst_173 = arith.constant dense<0.000000e+00> : vector<16x32xf32>
    %186 = tpu.matmul %160, %170, %cst_173 {dimension_numbers = #tpu.dot_dimension_numbers<[1], [0], [0], [1], [0, 0, 1, 1], [], []>} : vector<16x32xf32>, vector<32x32xf32>, vector<16x32xf32> -> vector<16x32xf32>
    %cst_174 = arith.constant dense<0.000000e+00> : vector<16x16xf32>
    %187 = tpu.matmul %186, %185, %cst_174 {dimension_numbers = #tpu.dot_dimension_numbers<[1], [1], [0], [0], [0, 0, 1, 0], [], []>} : vector<16x32xf32>, vector<16x32xf32>, vector<16x16xf32> -> vector<16x16xf32>
    %188 = arith.addf %187, %164 : vector<16x16xf32>
    %cst_175 = arith.constant dense<0xFF800000> : vector<16xf32>
    %189 = vector.multi_reduction <maximumf>, %188, %cst_175 [1] : vector<16x16xf32> to vector<16xf32>
    %190 = vector.shape_cast %189 : vector<16xf32> to vector<16x1xf32>
    %191 = vector.broadcast %190 : vector<16x1xf32> to vector<16x16xf32>
    %192 = arith.subf %188, %191 : vector<16x16xf32>
    %193 = math.exp %192 : vector<16x16xf32>
    %cst_176 = arith.constant dense<0.000000e+00> : vector<16xf32>
    %194 = vector.multi_reduction <add>, %193, %cst_176 [1] : vector<16x16xf32> to vector<16xf32>
    %195 = vector.shape_cast %194 : vector<16xf32> to vector<16x1xf32>
    %196 = tpu.reciprocal %195 {approx = true} : vector<16x1xf32> -> vector<16x1xf32>
    %197 = vector.broadcast %196 : vector<16x1xf32> to vector<16x16xf32>
    %198 = arith.mulf %193, %197 : vector<16x16xf32>
    %cst_177 = arith.constant dense<0.000000e+00> : vector<16x32xf32>
    %199 = tpu.matmul %198, %184, %cst_177 {dimension_numbers = #tpu.dot_dimension_numbers<[1], [0], [0], [1], [0, 0, 1, 1], [], []>} : vector<16x16xf32>, vector<16x32xf32>, vector<16x32xf32> -> vector<16x32xf32>
    %cst_178 = arith.constant dense<0.000000e+00> : vector<16x32xf32>
    %200 = tpu.matmul %199, %172, %cst_178 {dimension_numbers = #tpu.dot_dimension_numbers<[1], [0], [0], [1], [0, 0, 1, 1], [], []>} : vector<16x32xf32>, vector<32x32xf32>, vector<16x32xf32> -> vector<16x32xf32>
    %201 = vector.broadcast %177 : vector<1x32xf32> to vector<16x32xf32>
    %202 = arith.addf %200, %201 : vector<16x32xf32>
    %203 = arith.addf %202, %160 : vector<16x32xf32>
    %cst_179 = arith.constant dense<0.000000e+00> : vector<16xf32>
    %204 = vector.multi_reduction <add>, %203, %cst_179 [1] : vector<16x32xf32> to vector<16xf32>
    %205 = vector.shape_cast %204 : vector<16xf32> to vector<16x1xf32>
    %cst_180 = arith.constant 3.200000e+01 : f32
    %206 = vector.broadcast %cst_180 : f32 to vector<16x1xf32>
    %207 = arith.divf %205, %206 : vector<16x1xf32>
    %208 = arith.mulf %203, %203 : vector<16x32xf32>
    %cst_181 = arith.constant dense<0.000000e+00> : vector<16xf32>
    %209 = vector.multi_reduction <add>, %208, %cst_181 [1] : vector<16x32xf32> to vector<16xf32>
    %210 = vector.shape_cast %209 : vector<16xf32> to vector<16x1xf32>
    %cst_182 = arith.constant 3.200000e+01 : f32
    %211 = vector.broadcast %cst_182 : f32 to vector<16x1xf32>
    %212 = arith.divf %210, %211 : vector<16x1xf32>
    %213 = arith.mulf %207, %207 : vector<16x1xf32>
    %214 = arith.subf %212, %213 : vector<16x1xf32>
    %215 = vector.broadcast %207 : vector<16x1xf32> to vector<16x32xf32>
    %216 = arith.subf %203, %215 : vector<16x32xf32>
    %cst_183 = arith.constant 9.99999974E-6 : f32
    %217 = vector.broadcast %cst_183 : f32 to vector<16x1xf32>
    %218 = arith.addf %214, %217 : vector<16x1xf32>
    %219 = math.rsqrt %218 : vector<16x1xf32>
    %220 = vector.broadcast %219 : vector<16x1xf32> to vector<16x32xf32>
    %221 = arith.mulf %216, %220 : vector<16x32xf32>
    %222 = vector.broadcast %180 : vector<1x32xf32> to vector<16x32xf32>
    %223 = arith.mulf %221, %222 : vector<16x32xf32>
    %224 = vector.broadcast %181 : vector<1x32xf32> to vector<16x32xf32>
    %225 = arith.addf %223, %224 : vector<16x32xf32>
    %cst_184 = arith.constant dense<0.000000e+00> : vector<16x128xf32>
    %226 = tpu.matmul %225, %174, %cst_184 {dimension_numbers = #tpu.dot_dimension_numbers<[1], [0], [0], [1], [0, 0, 1, 1], [], []>} : vector<16x32xf32>, vector<32x128xf32>, vector<16x128xf32> -> vector<16x128xf32>
    %227 = vector.broadcast %178 : vector<1x128xf32> to vector<16x128xf32>
    %228 = arith.addf %226, %227 : vector<16x128xf32>
    %cst_185 = arith.constant 0.000000e+00 : f32
    %229 = vector.broadcast %cst_185 : f32 to vector<16x128xf32>
    %230 = arith.maximumf %228, %229 : vector<16x128xf32>
    %cst_186 = arith.constant dense<0.000000e+00> : vector<16x32xf32>
    %231 = tpu.matmul %230, %176, %cst_186 {dimension_numbers = #tpu.dot_dimension_numbers<[1], [0], [0], [1], [0, 0, 1, 1], [], []>} : vector<16x128xf32>, vector<128x32xf32>, vector<16x32xf32> -> vector<16x32xf32>
    %232 = vector.broadcast %179 : vector<1x32xf32> to vector<16x32xf32>
    %233 = arith.addf %231, %232 : vector<16x32xf32>
    %234 = arith.addf %233, %225 : vector<16x32xf32>
    %cst_187 = arith.constant dense<0.000000e+00> : vector<16xf32>
    %235 = vector.multi_reduction <add>, %234, %cst_187 [1] : vector<16x32xf32> to vector<16xf32>
    %236 = vector.shape_cast %235 : vector<16xf32> to vector<16x1xf32>
    %cst_188 = arith.constant 3.200000e+01 : f32
    %237 = vector.broadcast %cst_188 : f32 to vector<16x1xf32>
    %238 = arith.divf %236, %237 : vector<16x1xf32>
    %239 = arith.mulf %234, %234 : vector<16x32xf32>
    %cst_189 = arith.constant dense<0.000000e+00> : vector<16xf32>
    %240 = vector.multi_reduction <add>, %239, %cst_189 [1] : vector<16x32xf32> to vector<16xf32>
    %241 = vector.shape_cast %240 : vector<16xf32> to vector<16x1xf32>
    %cst_190 = arith.constant 3.200000e+01 : f32
    %242 = vector.broadcast %cst_190 : f32 to vector<16x1xf32>
    %243 = arith.divf %241, %242 : vector<16x1xf32>
    %244 = arith.mulf %238, %238 : vector<16x1xf32>
    %245 = arith.subf %243, %244 : vector<16x1xf32>
    %246 = vector.broadcast %238 : vector<16x1xf32> to vector<16x32xf32>
    %247 = arith.subf %234, %246 : vector<16x32xf32>
    %cst_191 = arith.constant 9.99999974E-6 : f32
    %248 = vector.broadcast %cst_191 : f32 to vector<16x1xf32>
    %249 = arith.addf %245, %248 : vector<16x1xf32>
    %250 = math.rsqrt %249 : vector<16x1xf32>
    %251 = vector.broadcast %250 : vector<16x1xf32> to vector<16x32xf32>
    %252 = arith.mulf %247, %251 : vector<16x32xf32>
    %253 = vector.broadcast %182 : vector<1x32xf32> to vector<16x32xf32>
    %254 = arith.mulf %252, %253 : vector<16x32xf32>
    %255 = vector.broadcast %183 : vector<1x32xf32> to vector<16x32xf32>
    %256 = arith.addf %254, %255 : vector<16x32xf32>
    %c0_192 = arith.constant 0 : index
    %c0_193 = arith.constant 0 : index
    %257 = vector.load %arg5[%c0_192, %c0_193] : memref<16x16xf32, #tpu.memory_space<vmem>>, vector<16x16xf32>
    %c4_194 = arith.constant 4 : index
    %c0_195 = arith.constant 0 : index
    %c0_196 = arith.constant 0 : index
    %258 = vector.load %arg6[%c4_194, %c0_195, %c0_196] : memref<8x32x32xf32, #tpu.memory_space<vmem>>, vector<1x32x32xf32>
    %259 = vector.shape_cast %258 : vector<1x32x32xf32> to vector<32x32xf32>
    %c5_197 = arith.constant 5 : index
    %c0_198 = arith.constant 0 : index
    %c0_199 = arith.constant 0 : index
    %260 = vector.load %arg6[%c5_197, %c0_198, %c0_199] : memref<8x32x32xf32, #tpu.memory_space<vmem>>, vector<1x32x32xf32>
    %261 = vector.shape_cast %260 : vector<1x32x32xf32> to vector<32x32xf32>
    %c6_200 = arith.constant 6 : index
    %c0_201 = arith.constant 0 : index
    %c0_202 = arith.constant 0 : index
    %262 = vector.load %arg6[%c6_200, %c0_201, %c0_202] : memref<8x32x32xf32, #tpu.memory_space<vmem>>, vector<1x32x32xf32>
    %263 = vector.shape_cast %262 : vector<1x32x32xf32> to vector<32x32xf32>
    %c7_203 = arith.constant 7 : index
    %c0_204 = arith.constant 0 : index
    %c0_205 = arith.constant 0 : index
    %264 = vector.load %arg6[%c7_203, %c0_204, %c0_205] : memref<8x32x32xf32, #tpu.memory_space<vmem>>, vector<1x32x32xf32>
    %265 = vector.shape_cast %264 : vector<1x32x32xf32> to vector<32x32xf32>
    %c1_206 = arith.constant 1 : index
    %c0_207 = arith.constant 0 : index
    %c0_208 = arith.constant 0 : index
    %266 = vector.load %arg7[%c1_206, %c0_207, %c0_208] : memref<2x32x128xf32, #tpu.memory_space<vmem>>, vector<1x32x128xf32>
    %267 = vector.shape_cast %266 : vector<1x32x128xf32> to vector<32x128xf32>
    %c1_209 = arith.constant 1 : index
    %c0_210 = arith.constant 0 : index
    %c0_211 = arith.constant 0 : index
    %268 = vector.load %arg8[%c1_209, %c0_210, %c0_211] : memref<2x128x32xf32, #tpu.memory_space<vmem>>, vector<1x128x32xf32>
    %269 = vector.shape_cast %268 : vector<1x128x32xf32> to vector<128x32xf32>
    %270 = vector.extract_strided_slice %162 {offsets = [6, 0], sizes = [1, 32], strides = [1, 1]} : vector<12x32xf32> to vector<1x32xf32>
    %271 = vector.extract_strided_slice %163 {offsets = [1, 0], sizes = [1, 128], strides = [1, 1]} : vector<2x128xf32> to vector<1x128xf32>
    %272 = vector.extract_strided_slice %162 {offsets = [7, 0], sizes = [1, 32], strides = [1, 1]} : vector<12x32xf32> to vector<1x32xf32>
    %273 = vector.extract_strided_slice %162 {offsets = [8, 0], sizes = [1, 32], strides = [1, 1]} : vector<12x32xf32> to vector<1x32xf32>
    %274 = vector.extract_strided_slice %162 {offsets = [9, 0], sizes = [1, 32], strides = [1, 1]} : vector<12x32xf32> to vector<1x32xf32>
    %275 = vector.extract_strided_slice %162 {offsets = [10, 0], sizes = [1, 32], strides = [1, 1]} : vector<12x32xf32> to vector<1x32xf32>
    %276 = vector.extract_strided_slice %162 {offsets = [11, 0], sizes = [1, 32], strides = [1, 1]} : vector<12x32xf32> to vector<1x32xf32>
    %cst_212 = arith.constant dense<0.000000e+00> : vector<16x32xf32>
    %277 = tpu.matmul %256, %259, %cst_212 {dimension_numbers = #tpu.dot_dimension_numbers<[1], [0], [0], [1], [0, 0, 1, 1], [], []>} : vector<16x32xf32>, vector<32x32xf32>, vector<16x32xf32> -> vector<16x32xf32>
    %cst_213 = arith.constant dense<0.000000e+00> : vector<16x32xf32>
    %278 = tpu.matmul %256, %261, %cst_213 {dimension_numbers = #tpu.dot_dimension_numbers<[1], [0], [0], [1], [0, 0, 1, 1], [], []>} : vector<16x32xf32>, vector<32x32xf32>, vector<16x32xf32> -> vector<16x32xf32>
    %cst_214 = arith.constant dense<0.000000e+00> : vector<16x32xf32>
    %279 = tpu.matmul %161, %263, %cst_214 {dimension_numbers = #tpu.dot_dimension_numbers<[1], [0], [0], [1], [0, 0, 1, 1], [], []>} : vector<16x32xf32>, vector<32x32xf32>, vector<16x32xf32> -> vector<16x32xf32>
    %cst_215 = arith.constant dense<0.000000e+00> : vector<16x16xf32>
    %280 = tpu.matmul %279, %278, %cst_215 {dimension_numbers = #tpu.dot_dimension_numbers<[1], [1], [0], [0], [0, 0, 1, 0], [], []>} : vector<16x32xf32>, vector<16x32xf32>, vector<16x16xf32> -> vector<16x16xf32>
    %281 = arith.addf %280, %257 : vector<16x16xf32>
    %cst_216 = arith.constant dense<0xFF800000> : vector<16xf32>
    %282 = vector.multi_reduction <maximumf>, %281, %cst_216 [1] : vector<16x16xf32> to vector<16xf32>
    %283 = vector.shape_cast %282 : vector<16xf32> to vector<16x1xf32>
    %284 = vector.broadcast %283 : vector<16x1xf32> to vector<16x16xf32>
    %285 = arith.subf %281, %284 : vector<16x16xf32>
    %286 = math.exp %285 : vector<16x16xf32>
    %cst_217 = arith.constant dense<0.000000e+00> : vector<16xf32>
    %287 = vector.multi_reduction <add>, %286, %cst_217 [1] : vector<16x16xf32> to vector<16xf32>
    %288 = vector.shape_cast %287 : vector<16xf32> to vector<16x1xf32>
    %289 = tpu.reciprocal %288 {approx = true} : vector<16x1xf32> -> vector<16x1xf32>
    %290 = vector.broadcast %289 : vector<16x1xf32> to vector<16x16xf32>
    %291 = arith.mulf %286, %290 : vector<16x16xf32>
    %cst_218 = arith.constant dense<0.000000e+00> : vector<16x32xf32>
    %292 = tpu.matmul %291, %277, %cst_218 {dimension_numbers = #tpu.dot_dimension_numbers<[1], [0], [0], [1], [0, 0, 1, 1], [], []>} : vector<16x16xf32>, vector<16x32xf32>, vector<16x32xf32> -> vector<16x32xf32>
    %cst_219 = arith.constant dense<0.000000e+00> : vector<16x32xf32>
    %293 = tpu.matmul %292, %265, %cst_219 {dimension_numbers = #tpu.dot_dimension_numbers<[1], [0], [0], [1], [0, 0, 1, 1], [], []>} : vector<16x32xf32>, vector<32x32xf32>, vector<16x32xf32> -> vector<16x32xf32>
    %294 = vector.broadcast %270 : vector<1x32xf32> to vector<16x32xf32>
    %295 = arith.addf %293, %294 : vector<16x32xf32>
    %296 = arith.addf %295, %161 : vector<16x32xf32>
    %cst_220 = arith.constant dense<0.000000e+00> : vector<16xf32>
    %297 = vector.multi_reduction <add>, %296, %cst_220 [1] : vector<16x32xf32> to vector<16xf32>
    %298 = vector.shape_cast %297 : vector<16xf32> to vector<16x1xf32>
    %cst_221 = arith.constant 3.200000e+01 : f32
    %299 = vector.broadcast %cst_221 : f32 to vector<16x1xf32>
    %300 = arith.divf %298, %299 : vector<16x1xf32>
    %301 = arith.mulf %296, %296 : vector<16x32xf32>
    %cst_222 = arith.constant dense<0.000000e+00> : vector<16xf32>
    %302 = vector.multi_reduction <add>, %301, %cst_222 [1] : vector<16x32xf32> to vector<16xf32>
    %303 = vector.shape_cast %302 : vector<16xf32> to vector<16x1xf32>
    %cst_223 = arith.constant 3.200000e+01 : f32
    %304 = vector.broadcast %cst_223 : f32 to vector<16x1xf32>
    %305 = arith.divf %303, %304 : vector<16x1xf32>
    %306 = arith.mulf %300, %300 : vector<16x1xf32>
    %307 = arith.subf %305, %306 : vector<16x1xf32>
    %308 = vector.broadcast %300 : vector<16x1xf32> to vector<16x32xf32>
    %309 = arith.subf %296, %308 : vector<16x32xf32>
    %cst_224 = arith.constant 9.99999974E-6 : f32
    %310 = vector.broadcast %cst_224 : f32 to vector<16x1xf32>
    %311 = arith.addf %307, %310 : vector<16x1xf32>
    %312 = math.rsqrt %311 : vector<16x1xf32>
    %313 = vector.broadcast %312 : vector<16x1xf32> to vector<16x32xf32>
    %314 = arith.mulf %309, %313 : vector<16x32xf32>
    %315 = vector.broadcast %273 : vector<1x32xf32> to vector<16x32xf32>
    %316 = arith.mulf %314, %315 : vector<16x32xf32>
    %317 = vector.broadcast %274 : vector<1x32xf32> to vector<16x32xf32>
    %318 = arith.addf %316, %317 : vector<16x32xf32>
    %cst_225 = arith.constant dense<0.000000e+00> : vector<16x128xf32>
    %319 = tpu.matmul %318, %267, %cst_225 {dimension_numbers = #tpu.dot_dimension_numbers<[1], [0], [0], [1], [0, 0, 1, 1], [], []>} : vector<16x32xf32>, vector<32x128xf32>, vector<16x128xf32> -> vector<16x128xf32>
    %320 = vector.broadcast %271 : vector<1x128xf32> to vector<16x128xf32>
    %321 = arith.addf %319, %320 : vector<16x128xf32>
    %cst_226 = arith.constant 0.000000e+00 : f32
    %322 = vector.broadcast %cst_226 : f32 to vector<16x128xf32>
    %323 = arith.maximumf %321, %322 : vector<16x128xf32>
    %cst_227 = arith.constant dense<0.000000e+00> : vector<16x32xf32>
    %324 = tpu.matmul %323, %269, %cst_227 {dimension_numbers = #tpu.dot_dimension_numbers<[1], [0], [0], [1], [0, 0, 1, 1], [], []>} : vector<16x128xf32>, vector<128x32xf32>, vector<16x32xf32> -> vector<16x32xf32>
    %325 = vector.broadcast %272 : vector<1x32xf32> to vector<16x32xf32>
    %326 = arith.addf %324, %325 : vector<16x32xf32>
    %327 = arith.addf %326, %318 : vector<16x32xf32>
    %cst_228 = arith.constant dense<0.000000e+00> : vector<16xf32>
    %328 = vector.multi_reduction <add>, %327, %cst_228 [1] : vector<16x32xf32> to vector<16xf32>
    %329 = vector.shape_cast %328 : vector<16xf32> to vector<16x1xf32>
    %cst_229 = arith.constant 3.200000e+01 : f32
    %330 = vector.broadcast %cst_229 : f32 to vector<16x1xf32>
    %331 = arith.divf %329, %330 : vector<16x1xf32>
    %332 = arith.mulf %327, %327 : vector<16x32xf32>
    %cst_230 = arith.constant dense<0.000000e+00> : vector<16xf32>
    %333 = vector.multi_reduction <add>, %332, %cst_230 [1] : vector<16x32xf32> to vector<16xf32>
    %334 = vector.shape_cast %333 : vector<16xf32> to vector<16x1xf32>
    %cst_231 = arith.constant 3.200000e+01 : f32
    %335 = vector.broadcast %cst_231 : f32 to vector<16x1xf32>
    %336 = arith.divf %334, %335 : vector<16x1xf32>
    %337 = arith.mulf %331, %331 : vector<16x1xf32>
    %338 = arith.subf %336, %337 : vector<16x1xf32>
    %339 = vector.broadcast %331 : vector<16x1xf32> to vector<16x32xf32>
    %340 = arith.subf %327, %339 : vector<16x32xf32>
    %cst_232 = arith.constant 9.99999974E-6 : f32
    %341 = vector.broadcast %cst_232 : f32 to vector<16x1xf32>
    %342 = arith.addf %338, %341 : vector<16x1xf32>
    %343 = math.rsqrt %342 : vector<16x1xf32>
    %344 = vector.broadcast %343 : vector<16x1xf32> to vector<16x32xf32>
    %345 = arith.mulf %340, %344 : vector<16x32xf32>
    %346 = vector.broadcast %275 : vector<1x32xf32> to vector<16x32xf32>
    %347 = arith.mulf %345, %346 : vector<16x32xf32>
    %348 = vector.broadcast %276 : vector<1x32xf32> to vector<16x32xf32>
    %349 = arith.addf %347, %348 : vector<16x32xf32>
    %c0_233 = arith.constant 0 : index
    %c0_234 = arith.constant 0 : index
    %350 = vector.load %arg9[%c0_233, %c0_234] : memref<32x128xf32, #tpu.memory_space<vmem>>, vector<32x128xf32>
    %cst_235 = arith.constant dense<0.000000e+00> : vector<16x128xf32>
    %351 = tpu.matmul %349, %350, %cst_235 {dimension_numbers = #tpu.dot_dimension_numbers<[1], [0], [0], [1], [0, 0, 1, 1], [], []>} : vector<16x32xf32>, vector<32x128xf32>, vector<16x128xf32> -> vector<16x128xf32>
    %c0_236 = arith.constant 0 : index
    %c0_237 = arith.constant 0 : index
    %352 = vector.load %arg12[%c0_236, %c0_237] : memref<1x128xf32, #tpu.memory_space<vmem>>, vector<1x128xf32>
    %353 = vector.broadcast %352 : vector<1x128xf32> to vector<16x128xf32>
    %354 = arith.addf %351, %353 : vector<16x128xf32>
    %c0_238 = arith.constant 0 : index
    %c0_239 = arith.constant 0 : index
    %355 = vector.load %arg13[%c0_238, %c0_239] : memref<16x128xf32, #tpu.memory_space<vmem>>, vector<16x128xf32>
    tpu.vector_store %arg13[%c0_238, %c0_239], %354 {strides = array<i32>} : memref<16x128xf32, #tpu.memory_space<vmem>>, vector<16x128xf32>,
    return
  }
}

</mosaic_0001>

<llo_original>
// kernel: simple_transformer_forward.1
$region0: #{simple_transformer_forward.1}
  #allocation0 [shape = 'u32[]', space=smem, size = 0x4, offset = 0x4, fixed_abs, tag = 'smem constant byte address 0x4 - core index']
  #allocation1 [shape = 'u32[144,128]{1,0:T(1,128)}', space=vmem, size = 0x12000, scoped, tag = 'internal scratch']
  #allocation2 [shape = 'f32[16,32]{1,0:T(8,128)}', space=vmem, size = 0x2000, scoped, tag = 'scratch operand']
  #allocation3 [shape = 'f32[16,32]{1,0:T(8,128)}', space=vmem, size = 0x2000, scoped, tag = 'scratch operand']
  %s0 = inlined_call_operand.vmem [shape: s32[16], index: 0, kind: input, shape index: {}]
  %s1 = inlined_call_operand.vmem [shape: s32[16], index: 1, kind: input, shape index: {}]
  %s2 = inlined_call_operand.vmem [shape: f32[50,1,32], index: 2, kind: input, shape index: {}]
  %s3 = inlined_call_operand.vmem [shape: f32[40,1,32], index: 3, kind: input, shape index: {}]
  %s4 = inlined_call_operand.vmem [shape: f32[16,16], index: 4, kind: input, shape index: {}]
  %s5 = inlined_call_operand.vmem [shape: f32[16,16], index: 5, kind: input, shape index: {}]
  %s6 = inlined_call_operand.vmem [shape: f32[8,32,32], index: 6, kind: input, shape index: {}]
  %s7 = inlined_call_operand.vmem [shape: f32[2,32,128], index: 7, kind: input, shape index: {}]
  %s8 = inlined_call_operand.vmem [shape: f32[2,128,32], index: 8, kind: input, shape index: {}]
  %s9 = inlined_call_operand.vmem [shape: f32[32,128], index: 9, kind: input, shape index: {}]
  %s10 = inlined_call_operand.vmem [shape: f32[12,32], index: 10, kind: input, shape index: {}]
  %s11 = inlined_call_operand.vmem [shape: f32[2,128], index: 11, kind: input, shape index: {}]
  %s12 = inlined_call_operand.vmem [shape: f32[1,128], index: 12, kind: input, shape index: {}]
  %s13 = inlined_call_operand.hbm [shape: f32[16,128], index: 13, kind: output, shape index: {}]
  %s14 = sld [smem:[#allocation0]]
  $region70: #{simple_transformer_forward.1} parent=0
    _
  %s16 = ssub.s32 1, %s14
  %s17 = scalar_select 0, %s16, %s14
  $region1: #{simple_transformer_forward.1} parent=0
    #allocation4 [shape = 'u8[512]{0}', space=smem, size = 0x200, scoped, tag = 'input window, operand 0, single buffered']
    #allocation5 [shape = 's32[1]{0}', space=sflag, size = 0x4, scoped, tag = 'scoped memory for simple_transformer_forward.1']
    #allocation6 [shape = 's32[1]{0}', space=sflag, size = 0x4, scoped, tag = 'scoped memory for simple_transformer_forward.1']
    #allocation7 [shape = 'u8[512]{0}', space=smem, size = 0x200, scoped, tag = 'input window, operand 1, single buffered']
    #allocation8 [shape = 's32[1]{0}', space=sflag, size = 0x4, scoped, tag = 'scoped memory for simple_transformer_forward.1']
    #allocation9 [shape = 'u8[8192]{0}', space=vmem, size = 0x2000, scoped, tag = 'output window, operand 0, single buffered']
    %18 = vsyncpa [#allocation6], 0
    %19 = vsyncpa [#allocation8], 0
    %20 = vsyncpa [#allocation5], 0
    // Predicated region
    $region2: #{simple_transformer_forward.1} parent=1 // pred_check
      _
    $region3: #{simple_transformer_forward.1} parent=1 // pred_check_branch
      %22 = sbr.rel (0) target = $region5
    $region4: #{simple_transformer_forward.1} parent=1 // pred_region
      %s24 = ssub.s32 16, 16
      %25 = vsyncadd [#allocation6], %s24
      %s27 = sshll.u32 %s0, 4
      %s28 = int_to_ptr.vmem [resolvable:$true] %s27
      %30 = dma.vmem_to_smem %s28, 16, [#allocation4], [#allocation6]
    $region5: #{simple_transformer_forward.1} parent=1 // pred_fallthru
      _
    // Predicated region
    $region6: #{simple_transformer_forward.1} parent=1 // pred_check
      _
    $region7: #{simple_transformer_forward.1} parent=1 // pred_check_branch
      %32 = sbr.rel (0) target = $region9
    $region8: #{simple_transformer_forward.1} parent=1 // pred_region
      %s34 = ssub.s32 16, 16
      %35 = vsyncadd [#allocation8], %s34
      %s37 = sshll.u32 %s1, 4
      %s38 = int_to_ptr.vmem [resolvable:$true] %s37
      %40 = dma.vmem_to_smem %s38, 16, [#allocation7], [#allocation8]
    $region9: #{simple_transformer_forward.1} parent=1 // pred_fallthru
      _
    // Predicated region
    $region10: #{simple_transformer_forward.1} parent=1 // pred_check
      _
    $region11: #{simple_transformer_forward.1} parent=1 // pred_check_branch
      %42 = sbr.rel (0) target = $region13
    $region12: #{simple_transformer_forward.1} parent=1 // pred_region
      _
    $region13: #{simple_transformer_forward.1} parent=1 // pred_fallthru
      _
    // Predicated region
    $region14: #{simple_transformer_forward.1} parent=1 // pred_check
      _
    $region15: #{simple_transformer_forward.1} parent=1 // pred_check_branch
      %44 = sbr.rel (0) target = $region17
    $region16: #{simple_transformer_forward.1} parent=1 // pred_region
      _
    $region17: #{simple_transformer_forward.1} parent=1 // pred_fallthru
      _
    // Predicated region
    $region18: #{simple_transformer_forward.1} parent=1 // pred_check
      _
    $region19: #{simple_transformer_forward.1} parent=1 // pred_check_branch
      %46 = sbr.rel (0) target = $region21
    $region20: #{simple_transformer_forward.1} parent=1 // pred_region
      _
    $region21: #{simple_transformer_forward.1} parent=1 // pred_fallthru
      _
    // Predicated region
    $region22: #{simple_transformer_forward.1} parent=1 // pred_check
      _
    $region23: #{simple_transformer_forward.1} parent=1 // pred_check_branch
      %48 = sbr.rel (0) target = $region25
    $region24: #{simple_transformer_forward.1} parent=1 // pred_region
      _
    $region25: #{simple_transformer_forward.1} parent=1 // pred_fallthru
      _
    // Predicated region
    $region26: #{simple_transformer_forward.1} parent=1 // pred_check
      _
    $region27: #{simple_transformer_forward.1} parent=1 // pred_check_branch
      %50 = sbr.rel (0) target = $region29
    $region28: #{simple_transformer_forward.1} parent=1 // pred_region
      _
    $region29: #{simple_transformer_forward.1} parent=1 // pred_fallthru
      _
    // Predicated region
    $region30: #{simple_transformer_forward.1} parent=1 // pred_check
      _
    $region31: #{simple_transformer_forward.1} parent=1 // pred_check_branch
      %52 = sbr.rel (0) target = $region33
    $region32: #{simple_transformer_forward.1} parent=1 // pred_region
      _
    $region33: #{simple_transformer_forward.1} parent=1 // pred_fallthru
      _
    // Predicated region
    $region34: #{simple_transformer_forward.1} parent=1 // pred_check
      _
    $region35: #{simple_transformer_forward.1} parent=1 // pred_check_branch
      %54 = sbr.rel (0) target = $region37
    $region36: #{simple_transformer_forward.1} parent=1 // pred_region
      _
    $region37: #{simple_transformer_forward.1} parent=1 // pred_fallthru
      _
    // Predicated region
    $region38: #{simple_transformer_forward.1} parent=1 // pred_check
      _
    $region39: #{simple_transformer_forward.1} parent=1 // pred_check_branch
      %56 = sbr.rel (0) target = $region41
    $region40: #{simple_transformer_forward.1} parent=1 // pred_region
      _
    $region41: #{simple_transformer_forward.1} parent=1 // pred_fallthru
      _
    // Predicated region
    $region42: #{simple_transformer_forward.1} parent=1 // pred_check
      _
    $region43: #{simple_transformer_forward.1} parent=1 // pred_check_branch
      %58 = sbr.rel (0) target = $region45
    $region44: #{simple_transformer_forward.1} parent=1 // pred_region
      _
    $region45: #{simple_transformer_forward.1} parent=1 // pred_fallthru
      _
    // Predicated region
    $region46: #{simple_transformer_forward.1} parent=1 // pred_check
      _
    $region47: #{simple_transformer_forward.1} parent=1 // pred_check_branch
      %60 = sbr.rel (0) target = $region49
    $region48: #{simple_transformer_forward.1} parent=1 // pred_region
      _
    $region49: #{simple_transformer_forward.1} parent=1 // pred_fallthru
      _
    // Predicated region
    $region50: #{simple_transformer_forward.1} parent=1 // pred_check
      _
    $region51: #{simple_transformer_forward.1} parent=1 // pred_check_branch
      %62 = sbr.rel (0) target = $region53
    $region52: #{simple_transformer_forward.1} parent=1 // pred_region
      _
    $region53: #{simple_transformer_forward.1} parent=1 // pred_fallthru
      _
    // Predicated region
    $region54: #{simple_transformer_forward.1} parent=1 // pred_check
      _
    $region55: #{simple_transformer_forward.1} parent=1 // pred_check_branch
      %64 = sbr.rel (0) target = $region57
    $region56: #{simple_transformer_forward.1} parent=1 // pred_region
      %65 = dma.done [#allocation6], 16
    $region57: #{simple_transformer_forward.1} parent=1 // pred_fallthru
      _
    // Predicated region
    $region58: #{simple_transformer_forward.1} parent=1 // pred_check
      _
    $region59: #{simple_transformer_forward.1} parent=1 // pred_check_branch
      %67 = sbr.rel (0) target = $region61
    $region60: #{simple_transformer_forward.1} parent=1 // pred_region
      %68 = dma.done [#allocation8], 16
    $region61: #{simple_transformer_forward.1} parent=1 // pred_fallthru
      _
    %69 = sfence
    %s70 = sld [smem:[#allocation4]]
    %s71 = scalar_lea.vmem %s2, %s70
    %v72 = vld [vmem:[%s71] sm:$0x1]
    %vm73 = vcmask 253952
    %74 = vst.msk [vmem:[#allocation2] sm:$0x1] %vm73, %v72
    %s75 = sld [smem:[#allocation4 + $0x1]]
    %s76 = scalar_lea.vmem %s2, %s75
    %v77 = vld [vmem:[%s76] sm:$0x1]
    %78 = vst.msk [vmem:[#allocation2 + $0x1] sm:$0x1] %vm73, %v77
    %s79 = sld [smem:[#allocation4 + $0x2]]
    %s80 = scalar_lea.vmem %s2, %s79
    %v81 = vld [vmem:[%s80] sm:$0x1]
    %82 = vst.msk [vmem:[#allocation2 + $0x2] sm:$0x1] %vm73, %v81
    %s83 = sld [smem:[#allocation4 + $0x3]]
    %s84 = scalar_lea.vmem %s2, %s83
    %v85 = vld [vmem:[%s84] sm:$0x1]
    %86 = vst.msk [vmem:[#allocation2 + $0x3] sm:$0x1] %vm73, %v85
    %s87 = sld [smem:[#allocation4 + $0x4]]
    %s88 = scalar_lea.vmem %s2, %s87
    %v89 = vld [vmem:[%s88] sm:$0x1]
    %90 = vst.msk [vmem:[#allocation2 + $0x4] sm:$0x1] %vm73, %v89
    %s91 = sld [smem:[#allocation4 + $0x5]]
    %s92 = scalar_lea.vmem %s2, %s91
    %v93 = vld [vmem:[%s92] sm:$0x1]
    %94 = vst.msk [vmem:[#allocation2 + $0x5] sm:$0x1] %vm73, %v93
    %s95 = sld [smem:[#allocation4 + $0x6]]
    %s96 = scalar_lea.vmem %s2, %s95
    %v97 = vld [vmem:[%s96] sm:$0x1]
    %98 = vst.msk [vmem:[#allocation2 + $0x6] sm:$0x1] %vm73, %v97
    %s99 = sld [smem:[#allocation4 + $0x7]]
    %s100 = scalar_lea.vmem %s2, %s99
    %v101 = vld [vmem:[%s100] sm:$0x1]
    %102 = vst.msk [vmem:[#allocation2 + $0x7] sm:$0x1] %vm73, %v101
    %s103 = sld [smem:[#allocation4 + $0x8]]
    %s104 = scalar_lea.vmem %s2, %s103
    %v105 = vld [vmem:[%s104] sm:$0x1]
    %106 = vst.msk [vmem:[#allocation2 + $0x8] sm:$0x1] %vm73, %v105
    %s107 = sld [smem:[#allocation4 + $0x9]]
    %s108 = scalar_lea.vmem %s2, %s107
    %v109 = vld [vmem:[%s108] sm:$0x1]
    %110 = vst.msk [vmem:[#allocation2 + $0x9] sm:$0x1] %vm73, %v109
    %s111 = sld [smem:[#allocation4 + $0xa]]
    %s112 = scalar_lea.vmem %s2, %s111
    %v113 = vld [vmem:[%s112] sm:$0x1]
    %114 = vst.msk [vmem:[#allocation2 + $0xa] sm:$0x1] %vm73, %v113
    %s115 = sld [smem:[#allocation4 + $0xb]]
    %s116 = scalar_lea.vmem %s2, %s115
    %v117 = vld [vmem:[%s116] sm:$0x1]
    %118 = vst.msk [vmem:[#allocation2 + $0xb] sm:$0x1] %vm73, %v117
    %s119 = sld [smem:[#allocation4 + $0xc]]
    %s120 = scalar_lea.vmem %s2, %s119
    %v121 = vld [vmem:[%s120] sm:$0x1]
    %122 = vst.msk [vmem:[#allocation2 + $0xc] sm:$0x1] %vm73, %v121
    %s123 = sld [smem:[#allocation4 + $0xd]]
    %s124 = scalar_lea.vmem %s2, %s123
    %v125 = vld [vmem:[%s124] sm:$0x1]
    %126 = vst.msk [vmem:[#allocation2 + $0xd] sm:$0x1] %vm73, %v125
    %s127 = sld [smem:[#allocation4 + $0xe]]
    %s128 = scalar_lea.vmem %s2, %s127
    %v129 = vld [vmem:[%s128] sm:$0x1]
    %130 = vst.msk [vmem:[#allocation2 + $0xe] sm:$0x1] %vm73, %v129
    %s131 = sld [smem:[#allocation4 + $0xf]]
    %s132 = scalar_lea.vmem %s2, %s131
    %v133 = vld [vmem:[%s132] sm:$0x1]
    %134 = vst.msk [vmem:[#allocation2 + $0xf] sm:$0x1] %vm73, %v133
    %s135 = sld [smem:[#allocation7]]
    %s136 = scalar_lea.vmem %s3, %s135
    %v137 = vld [vmem:[%s136] sm:$0x1]
    %138 = vst.msk [vmem:[#allocation3] sm:$0x1] %vm73, %v137
    %s139 = sld [smem:[#allocation7 + $0x1]]
    %s140 = scalar_lea.vmem %s3, %s139
    %v141 = vld [vmem:[%s140] sm:$0x1]
    %142 = vst.msk [vmem:[#allocation3 + $0x1] sm:$0x1] %vm73, %v141
    %s143 = sld [smem:[#allocation7 + $0x2]]
    %s144 = scalar_lea.vmem %s3, %s143
    %v145 = vld [vmem:[%s144] sm:$0x1]
    %146 = vst.msk [vmem:[#allocation3 + $0x2] sm:$0x1] %vm73, %v145
    %s147 = sld [smem:[#allocation7 + $0x3]]
    %s148 = scalar_lea.vmem %s3, %s147
    %v149 = vld [vmem:[%s148] sm:$0x1]
    %150 = vst.msk [vmem:[#allocation3 + $0x3] sm:$0x1] %vm73, %v149
    %s151 = sld [smem:[#allocation7 + $0x4]]
    %s152 = scalar_lea.vmem %s3, %s151
    %v153 = vld [vmem:[%s152] sm:$0x1]
    %154 = vst.msk [vmem:[#allocation3 + $0x4] sm:$0x1] %vm73, %v153
    %s155 = sld [smem:[#allocation7 + $0x5]]
    %s156 = scalar_lea.vmem %s3, %s155
    %v157 = vld [vmem:[%s156] sm:$0x1]
    %158 = vst.msk [vmem:[#allocation3 + $0x5] sm:$0x1] %vm73, %v157
    %s159 = sld [smem:[#allocation7 + $0x6]]
    %s160 = scalar_lea.vmem %s3, %s159
    %v161 = vld [vmem:[%s160] sm:$0x1]
    %162 = vst.msk [vmem:[#allocation3 + $0x6] sm:$0x1] %vm73, %v161
    %s163 = sld [smem:[#allocation7 + $0x7]]
    %s164 = scalar_lea.vmem %s3, %s163
    %v165 = vld [vmem:[%s164] sm:$0x1]
    %166 = vst.msk [vmem:[#allocation3 + $0x7] sm:$0x1] %vm73, %v165
    %s167 = sld [smem:[#allocation7 + $0x8]]
    %s168 = scalar_lea.vmem %s3, %s167
    %v169 = vld [vmem:[%s168] sm:$0x1]
    %170 = vst.msk [vmem:[#allocation3 + $0x8] sm:$0x1] %vm73, %v169
    %s171 = sld [smem:[#allocation7 + $0x9]]
    %s172 = scalar_lea.vmem %s3, %s171
    %v173 = vld [vmem:[%s172] sm:$0x1]
    %174 = vst.msk [vmem:[#allocation3 + $0x9] sm:$0x1] %vm73, %v173
    %s175 = sld [smem:[#allocation7 + $0xa]]
    %s176 = scalar_lea.vmem %s3, %s175
    %v177 = vld [vmem:[%s176] sm:$0x1]
    %178 = vst.msk [vmem:[#allocation3 + $0xa] sm:$0x1] %vm73, %v177
    %s179 = sld [smem:[#allocation7 + $0xb]]
    %s180 = scalar_lea.vmem %s3, %s179
    %v181 = vld [vmem:[%s180] sm:$0x1]
    %182 = vst.msk [vmem:[#allocation3 + $0xb] sm:$0x1] %vm73, %v181
    %s183 = sld [smem:[#allocation7 + $0xc]]
    %s184 = scalar_lea.vmem %s3, %s183
    %v185 = vld [vmem:[%s184] sm:$0x1]
    %186 = vst.msk [vmem:[#allocation3 + $0xc] sm:$0x1] %vm73, %v185
    %s187 = sld [smem:[#allocation7 + $0xd]]
    %s188 = scalar_lea.vmem %s3, %s187
    %v189 = vld [vmem:[%s188] sm:$0x1]
    %190 = vst.msk [vmem:[#allocation3 + $0xd] sm:$0x1] %vm73, %v189
    %s191 = sld [smem:[#allocation7 + $0xe]]
    %s192 = scalar_lea.vmem %s3, %s191
    %v193 = vld [vmem:[%s192] sm:$0x1]
    %194 = vst.msk [vmem:[#allocation3 + $0xe] sm:$0x1] %vm73, %v193
    %s195 = sld [smem:[#allocation7 + $0xf]]
    %s196 = scalar_lea.vmem %s3, %s195
    %v197 = vld [vmem:[%s196] sm:$0x1]
    %198 = vst.msk [vmem:[#allocation3 + $0xf] sm:$0x1] %vm73, %v197
    %v199 = vld [vmem:[#allocation2] sm:$0xff]
    %v200 = vld [vmem:[#allocation2 + $0x8] sm:$0xff]
    %v201 = vld [vmem:[#allocation3] sm:$0xff]
    %v202 = vld [vmem:[#allocation3 + $0x8] sm:$0xff]
    %v203 = vld [vmem:[%s10] sm:$0xff]
    %v204 = vld [vmem:[%s10 + $0x8] sm:$0xf]
    %v205 = vld [vmem:[%s11] sm:$0x3]
    %v206 = vld [vmem:[%s4] sm:$0xff]
    %v207 = vld [vmem:[%s4 + $0x8] sm:$0xff]
    %v208 = vld [vmem:[%s6] sm:$0xff]
    %v209 = vld [vmem:[%s6 + $0x8] sm:$0xff]
    %v210 = vld [vmem:[%s6 + $0x10] sm:$0xff]
    %v211 = vld [vmem:[%s6 + $0x18] sm:$0xff]
    %s212 = scalar_lea.vmem %s6, 32
    %v213 = vld [vmem:[%s212] sm:$0xff]
    %v214 = vld [vmem:[%s212 + $0x8] sm:$0xff]
    %v215 = vld [vmem:[%s212 + $0x10] sm:$0xff]
    %v216 = vld [vmem:[%s212 + $0x18] sm:$0xff]
    %s217 = scalar_lea.vmem %s6, 64
    %v218 = vld [vmem:[%s217] sm:$0xff]
    %v219 = vld [vmem:[%s217 + $0x8] sm:$0xff]
    %v220 = vld [vmem:[%s217 + $0x10] sm:$0xff]
    %v221 = vld [vmem:[%s217 + $0x18] sm:$0xff]
    %s222 = scalar_lea.vmem %s6, 96
    %v223 = vld [vmem:[%s222] sm:$0xff]
    %v224 = vld [vmem:[%s222 + $0x8] sm:$0xff]
    %v225 = vld [vmem:[%s222 + $0x10] sm:$0xff]
    %v226 = vld [vmem:[%s222 + $0x18] sm:$0xff]
    %v227 = vld [vmem:[%s7] sm:$0xff]
    %v228 = vld [vmem:[%s7 + $0x8] sm:$0xff]
    %v229 = vld [vmem:[%s7 + $0x10] sm:$0xff]
    %v230 = vld [vmem:[%s7 + $0x18] sm:$0xff]
    %v231 = vld [vmem:[%s8] sm:$0xff]
    %v232 = vld [vmem:[%s8 + $0x8] sm:$0xff]
    %v233 = vld [vmem:[%s8 + $0x10] sm:$0xff]
    %v234 = vld [vmem:[%s8 + $0x18] sm:$0xff]
    %v235 = vld [vmem:[%s8 + $0x20] sm:$0xff]
    %v236 = vld [vmem:[%s8 + $0x28] sm:$0xff]
    %v237 = vld [vmem:[%s8 + $0x30] sm:$0xff]
    %v238 = vld [vmem:[%s8 + $0x38] sm:$0xff]
    %v239 = vld [vmem:[%s8 + $0x40] sm:$0xff]
    %v240 = vld [vmem:[%s8 + $0x48] sm:$0xff]
    %v241 = vld [vmem:[%s8 + $0x50] sm:$0xff]
    %v242 = vld [vmem:[%s8 + $0x58] sm:$0xff]
    %v243 = vld [vmem:[%s8 + $0x60] sm:$0xff]
    %v244 = vld [vmem:[%s8 + $0x68] sm:$0xff]
    %v245 = vld [vmem:[%s8 + $0x70] sm:$0xff]
    %v246 = vld [vmem:[%s8 + $0x78] sm:$0xff]
    %vm247 = vcmask 261120
    %v249 = vsel %vm247, %v199, 0
    %v252 = vsel %vm247, %v200, 0
    %254 = vmatprep.subr.mxu0 0.0
    %255 = vmatpush1.msra.mxu0 %v208
    %256 = vmatprep.subr.mxu0 0.0
    %257 = vmatpush1.msra.mxu0 %v209
    %258 = vmatprep.subr.mxu0 0.0
    %259 = vmatpush1.msra.mxu0 %v210
    %260 = vmatprep.subr.mxu0 0.0
    %261 = vmatpush1.msra.mxu0 %v211
    %262 = vmatprep.subr.mxu0 0.0
    %263 = vmatpush1.msra.mxu0 0.0
    %264 = vmatprep.subr.mxu0 0.0
    %265 = vmatpush1.msra.mxu0 0.0
    %266 = vmatprep.subr.mxu0 0.0
    %267 = vmatpush1.msra.mxu0 0.0
    %268 = vmatprep.subr.mxu0 0.0
    %269 = vmatpush1.msra.mxu0 0.0
    %270 = vmatprep.subr.mxu0 0.0
    %271 = vmatpush1.msra.mxu0 0.0
    %272 = vmatprep.subr.mxu0 0.0
    %273 = vmatpush1.msra.mxu0 0.0
    %274 = vmatprep.subr.mxu0 0.0
    %275 = vmatpush1.msra.mxu0 0.0
    %276 = vmatprep.subr.mxu0 0.0
    %277 = vmatpush1.msra.mxu0 0.0
    %278 = vmatprep.subr.mxu0 0.0
    %279 = vmatpush1.msra.mxu0 0.0
    %280 = vmatprep.subr.mxu0 0.0
    %281 = vmatpush1.msra.mxu0 0.0
    %282 = vmatprep.subr.mxu0 0.0
    %283 = vmatpush1.msra.mxu0 0.0
    %284 = vmatprep.subr.mxu0 0.0
    %285 = vmatpush1.msra.mxu0 0.0
    %286 = vmatprep.subr.mxu0 0.0
    %287 = vmatpush1.msra.mxu0 0.0
    %288 = vmatprep.subr.mxu0 0.0
    %289 = vmatpush1.msra.mxu0 0.0
    %290 = vmatprep.subr.mxu0 0.0
    %291 = vmatpush1.msra.mxu0 0.0
    %292 = vmatprep.subr.mxu0 0.0
    %293 = vmatpush1.msra.mxu0 0.0
    %294 = vmatprep.subr.mxu0 0.0
    %295 = vmatpush1.msra.mxu0 0.0
    %296 = vmatprep.subr.mxu0 0.0
    %297 = vmatpush1.msra.mxu0 0.0
    %298 = vmatprep.subr.mxu0 0.0
    %299 = vmatpush1.msra.mxu0 0.0
    %300 = vmatprep.subr.mxu0 0.0
    %301 = vmatpush1.msra.mxu0 0.0
    %302 = vmatprep.subr.mxu0 0.0
    %303 = vmatpush1.msra.mxu0 0.0
    %304 = vmatprep.subr.mxu0 0.0
    %305 = vmatpush1.msra.mxu0 0.0
    %306 = vmatprep.subr.mxu0 0.0
    %307 = vmatpush1.msra.mxu0 0.0
    %308 = vmatprep.subr.mxu0 0.0
    %309 = vmatpush1.msra.mxu0 0.0
    %310 = vmatprep.subr.mxu0 0.0
    %311 = vmatpush1.msra.mxu0 0.0
    %312 = vmatprep.subr.mxu0 0.0
    %313 = vmatpush1.msra.mxu0 0.0
    %314 = vmatprep.subr.mxu0 0.0
    %315 = vmatpush1.msra.mxu0 0.0
    %316 = vmatprep.subr.mxu0 0.0
    %317 = vmatpush1.msra.mxu0 0.0
    %318 = vmatprep.mubr.f32.mxu0 0.0
    %319 = vmatmul.mubr.f32.gmra.mrb[0].mxu0 %v249
    %v320 = vpop.f32.mrb[0].mxu0
    %v321 = vadd.f32 0.0, %v320
    %v322 = vpop.f32.mrb[0].mxu0
    %323 = vmatprep.mubr.f32.mxu0 0.0
    %324 = vmatmul.mubr.f32.gmra.mrb[0].mxu0 %v252
    %v325 = vpop.f32.mrb[0].mxu0
    %v326 = vadd.f32 0.0, %v325
    %v327 = vpop.f32.mrb[0].mxu0
    %328 = vdwg.mxu0
    %329 = vmatprep.subr.mxu0 0.0
    %330 = vmatpush1.msra.mxu0 %v213
    %331 = vmatprep.subr.mxu0 0.0
    %332 = vmatpush1.msra.mxu0 %v214
    %333 = vmatprep.subr.mxu0 0.0
    %334 = vmatpush1.msra.mxu0 %v215
    %335 = vmatprep.subr.mxu0 0.0
    %336 = vmatpush1.msra.mxu0 %v216
    %337 = vmatprep.subr.mxu0 0.0
    %338 = vmatpush1.msra.mxu0 0.0
    %339 = vmatprep.subr.mxu0 0.0
    %340 = vmatpush1.msra.mxu0 0.0
    %341 = vmatprep.subr.mxu0 0.0
    %342 = vmatpush1.msra.mxu0 0.0
    %343 = vmatprep.subr.mxu0 0.0
    %344 = vmatpush1.msra.mxu0 0.0
    %345 = vmatprep.subr.mxu0 0.0
    %346 = vmatpush1.msra.mxu0 0.0
    %347 = vmatprep.subr.mxu0 0.0
    %348 = vmatpush1.msra.mxu0 0.0
    %349 = vmatprep.subr.mxu0 0.0
    %350 = vmatpush1.msra.mxu0 0.0
    %351 = vmatprep.subr.mxu0 0.0
    %352 = vmatpush1.msra.mxu0 0.0
    %353 = vmatprep.subr.mxu0 0.0
    %354 = vmatpush1.msra.mxu0 0.0
    %355 = vmatprep.subr.mxu0 0.0
    %356 = vmatpush1.msra.mxu0 0.0
    %357 = vmatprep.subr.mxu0 0.0
    %358 = vmatpush1.msra.mxu0 0.0
    %359 = vmatprep.subr.mxu0 0.0
    %360 = vmatpush1.msra.mxu0 0.0
    %361 = vmatprep.subr.mxu0 0.0
    %362 = vmatpush1.msra.mxu0 0.0
    %363 = vmatprep.subr.mxu0 0.0
    %364 = vmatpush1.msra.mxu0 0.0
    %365 = vmatprep.subr.mxu0 0.0
    %366 = vmatpush1.msra.mxu0 0.0
    %367 = vmatprep.subr.mxu0 0.0
    %368 = vmatpush1.msra.mxu0 0.0
    %369 = vmatprep.subr.mxu0 0.0
    %370 = vmatpush1.msra.mxu0 0.0
    %371 = vmatprep.subr.mxu0 0.0
    %372 = vmatpush1.msra.mxu0 0.0
    %373 = vmatprep.subr.mxu0 0.0
    %374 = vmatpush1.msra.mxu0 0.0
    %375 = vmatprep.subr.mxu0 0.0
    %376 = vmatpush1.msra.mxu0 0.0
    %377 = vmatprep.subr.mxu0 0.0
    %378 = vmatpush1.msra.mxu0 0.0
    %379 = vmatprep.subr.mxu0 0.0
    %380 = vmatpush1.msra.mxu0 0.0
    %381 = vmatprep.subr.mxu0 0.0
    %382 = vmatpush1.msra.mxu0 0.0
    %383 = vmatprep.subr.mxu0 0.0
    %384 = vmatpush1.msra.mxu0 0.0
    %385 = vmatprep.subr.mxu0 0.0
    %386 = vmatpush1.msra.mxu0 0.0
    %387 = vmatprep.subr.mxu0 0.0
    %388 = vmatpush1.msra.mxu0 0.0
    %389 = vmatprep.subr.mxu0 0.0
    %390 = vmatpush1.msra.mxu0 0.0
    %391 = vmatprep.subr.mxu0 0.0
    %392 = vmatpush1.msra.mxu0 0.0
    %393 = vmatprep.mubr.f32.mxu0 0.0
    %394 = vmatmul.mubr.f32.gmra.mrb[0].mxu0 %v249
    %v395 = vpop.f32.mrb[0].mxu0
    %v396 = vadd.f32 0.0, %v395
    %v397 = vpop.f32.mrb[0].mxu0
    %398 = vmatprep.mubr.f32.mxu0 0.0
    %399 = vmatmul.mubr.f32.gmra.mrb[0].mxu0 %v252
    %v400 = vpop.f32.mrb[0].mxu0
    %v401 = vadd.f32 0.0, %v400
    %v402 = vpop.f32.mrb[0].mxu0
    %403 = vdwg.mxu0
    %404 = vmatprep.subr.mxu0 0.0
    %405 = vmatpush1.msra.mxu0 %v218
    %406 = vmatprep.subr.mxu0 0.0
    %407 = vmatpush1.msra.mxu0 %v219
    %408 = vmatprep.subr.mxu0 0.0
    %409 = vmatpush1.msra.mxu0 %v220
    %410 = vmatprep.subr.mxu0 0.0
    %411 = vmatpush1.msra.mxu0 %v221
    %412 = vmatprep.subr.mxu0 0.0
    %413 = vmatpush1.msra.mxu0 0.0
    %414 = vmatprep.subr.mxu0 0.0
    %415 = vmatpush1.msra.mxu0 0.0
    %416 = vmatprep.subr.mxu0 0.0
    %417 = vmatpush1.msra.mxu0 0.0
    %418 = vmatprep.subr.mxu0 0.0
    %419 = vmatpush1.msra.mxu0 0.0
    %420 = vmatprep.subr.mxu0 0.0
    %421 = vmatpush1.msra.mxu0 0.0
    %422 = vmatprep.subr.mxu0 0.0
    %423 = vmatpush1.msra.mxu0 0.0
    %424 = vmatprep.subr.mxu0 0.0
    %425 = vmatpush1.msra.mxu0 0.0
    %426 = vmatprep.subr.mxu0 0.0
    %427 = vmatpush1.msra.mxu0 0.0
    %428 = vmatprep.subr.mxu0 0.0
    %429 = vmatpush1.msra.mxu0 0.0
    %430 = vmatprep.subr.mxu0 0.0
    %431 = vmatpush1.msra.mxu0 0.0
    %432 = vmatprep.subr.mxu0 0.0
    %433 = vmatpush1.msra.mxu0 0.0
    %434 = vmatprep.subr.mxu0 0.0
    %435 = vmatpush1.msra.mxu0 0.0
    %436 = vmatprep.subr.mxu0 0.0
    %437 = vmatpush1.msra.mxu0 0.0
    %438 = vmatprep.subr.mxu0 0.0
    %439 = vmatpush1.msra.mxu0 0.0
    %440 = vmatprep.subr.mxu0 0.0
    %441 = vmatpush1.msra.mxu0 0.0
    %442 = vmatprep.subr.mxu0 0.0
    %443 = vmatpush1.msra.mxu0 0.0
    %444 = vmatprep.subr.mxu0 0.0
    %445 = vmatpush1.msra.mxu0 0.0
    %446 = vmatprep.subr.mxu0 0.0
    %447 = vmatpush1.msra.mxu0 0.0
    %448 = vmatprep.subr.mxu0 0.0
    %449 = vmatpush1.msra.mxu0 0.0
    %450 = vmatprep.subr.mxu0 0.0
    %451 = vmatpush1.msra.mxu0 0.0
    %452 = vmatprep.subr.mxu0 0.0
    %453 = vmatpush1.msra.mxu0 0.0
    %454 = vmatprep.subr.mxu0 0.0
    %455 = vmatpush1.msra.mxu0 0.0
    %456 = vmatprep.subr.mxu0 0.0
    %457 = vmatpush1.msra.mxu0 0.0
    %458 = vmatprep.subr.mxu0 0.0
    %459 = vmatpush1.msra.mxu0 0.0
    %460 = vmatprep.subr.mxu0 0.0
    %461 = vmatpush1.msra.mxu0 0.0
    %462 = vmatprep.subr.mxu0 0.0
    %463 = vmatpush1.msra.mxu0 0.0
    %464 = vmatprep.subr.mxu0 0.0
    %465 = vmatpush1.msra.mxu0 0.0
    %466 = vmatprep.subr.mxu0 0.0
    %467 = vmatpush1.msra.mxu0 0.0
    %468 = vmatprep.mubr.f32.mxu0 0.0
    %469 = vmatmul.mubr.f32.gmra.mrb[0].mxu0 %v249
    %v470 = vpop.f32.mrb[0].mxu0
    %v471 = vadd.f32 0.0, %v470
    %v472 = vpop.f32.mrb[0].mxu0
    %473 = vmatprep.mubr.f32.mxu0 0.0
    %474 = vmatmul.mubr.f32.gmra.mrb[0].mxu0 %v252
    %v475 = vpop.f32.mrb[0].mxu0
    %v476 = vadd.f32 0.0, %v475
    %v477 = vpop.f32.mrb[0].mxu0
    %478 = vdwg.mxu0
    %v480 = vsel %vm247, %v471, 0
    %v483 = vsel %vm247, %v476, 0
    %v486 = vsel %vm247, %v396, 0
    %v489 = vsel %vm247, %v401, 0
    %491 = vmatprep.subr.mxu0 0.0
    %492 = vmatpush1.xpose.msra.mxu0 %v486
    %493 = vmatprep.subr.mxu0 0.0
    %494 = vmatpush1.xpose.msra.mxu0 %v489
    %495 = vmatprep.subr.mxu0 0.0
    %496 = vmatpush1.xpose.msra.mxu0 0.0
    %497 = vmatprep.subr.mxu0 0.0
    %498 = vmatpush1.xpose.msra.mxu0 0.0
    %499 = vmatprep.subr.mxu0 0.0
    %500 = vmatpush1.xpose.msra.mxu0 0.0
    %501 = vmatprep.subr.mxu0 0.0
    %502 = vmatpush1.xpose.msra.mxu0 0.0
    %503 = vmatprep.subr.mxu0 0.0
    %504 = vmatpush1.xpose.msra.mxu0 0.0
    %505 = vmatprep.subr.mxu0 0.0
    %506 = vmatpush1.xpose.msra.mxu0 0.0
    %507 = vmatprep.subr.mxu0 0.0
    %508 = vmatpush1.xpose.msra.mxu0 0.0
    %509 = vmatprep.subr.mxu0 0.0
    %510 = vmatpush1.xpose.msra.mxu0 0.0
    %511 = vmatprep.subr.mxu0 0.0
    %512 = vmatpush1.xpose.msra.mxu0 0.0
    %513 = vmatprep.subr.mxu0 0.0
    %514 = vmatpush1.xpose.msra.mxu0 0.0
    %515 = vmatprep.subr.mxu0 0.0
    %516 = vmatpush1.xpose.msra.mxu0 0.0
    %517 = vmatprep.subr.mxu0 0.0
    %518 = vmatpush1.xpose.msra.mxu0 0.0
    %519 = vmatprep.subr.mxu0 0.0
    %520 = vmatpush1.xpose.msra.mxu0 0.0
    %521 = vmatprep.subr.mxu0 0.0
    %522 = vmatpush1.xpose.msra.mxu0 0.0
    %523 = vmatprep.subr.mxu0 0.0
    %524 = vmatpush1.xpose.msra.mxu0 0.0
    %525 = vmatprep.subr.mxu0 0.0
    %526 = vmatpush1.xpose.msra.mxu0 0.0
    %527 = vmatprep.subr.mxu0 0.0
    %528 = vmatpush1.xpose.msra.mxu0 0.0
    %529 = vmatprep.subr.mxu0 0.0
    %530 = vmatpush1.xpose.msra.mxu0 0.0
    %531 = vmatprep.subr.mxu0 0.0
    %532 = vmatpush1.xpose.msra.mxu0 0.0
    %533 = vmatprep.subr.mxu0 0.0
    %534 = vmatpush1.xpose.msra.mxu0 0.0
    %535 = vmatprep.subr.mxu0 0.0
    %536 = vmatpush1.xpose.msra.mxu0 0.0
    %537 = vmatprep.subr.mxu0 0.0
    %538 = vmatpush1.xpose.msra.mxu0 0.0
    %539 = vmatprep.subr.mxu0 0.0
    %540 = vmatpush1.xpose.msra.mxu0 0.0
    %541 = vmatprep.subr.mxu0 0.0
    %542 = vmatpush1.xpose.msra.mxu0 0.0
    %543 = vmatprep.subr.mxu0 0.0
    %544 = vmatpush1.xpose.msra.mxu0 0.0
    %545 = vmatprep.subr.mxu0 0.0
    %546 = vmatpush1.xpose.msra.mxu0 0.0
    %547 = vmatprep.subr.mxu0 0.0
    %548 = vmatpush1.xpose.msra.mxu0 0.0
    %549 = vmatprep.subr.mxu0 0.0
    %550 = vmatpush1.xpose.msra.mxu0 0.0
    %551 = vmatprep.subr.mxu0 0.0
    %552 = vmatpush1.xpose.msra.mxu0 0.0
    %553 = vmatprep.subr.mxu0 0.0
    %554 = vmatpush1.xpose.msra.mxu0 0.0
    %555 = vmatprep.mubr.f32.mxu0 0.0
    %556 = vmatmul.mubr.f32.gmra.mrb[0].mxu0 %v480
    %v557 = vpop.f32.mrb[0].mxu0
    %v558 = vadd.f32 %v206, %v557
    %v559 = vpop.f32.mrb[0].mxu0
    %560 = vmatprep.mubr.f32.mxu0 0.0
    %561 = vmatmul.mubr.f32.gmra.mrb[0].mxu0 %v483
    %v562 = vpop.f32.mrb[0].mxu0
    %v563 = vadd.f32 %v207, %v562
    %v564 = vpop.f32.mrb[0].mxu0
    %565 = vdwg.mxu0
    %vm566 = vcmask 130048
    %v567 = vsel %vm566, %v558, -inf
    %568 = vmax.xlane.f32.xlu0 %v567
    %v569 = vpop.xlane.xlu0 %568
    %v570 = vsel %vm566, %v563, -inf
    %571 = vmax.xlane.f32.xlu0 %v570
    %v572 = vpop.xlane.xlu0 %571
    %v573 = vsub.f32 %v558, %v569
    %v574 = vsub.f32 %v563, %v572
    %v575 = vmul.f32 %v573, 1.442695
    %v576 = vpow.pop %v575
    %v577 = vmul.f32 %v574, 1.442695
    %v578 = vpow.pop %v577
    %v579 = vsel %vm566, %v576, 0.0
    %580 = vadd.xlane.f32.xlu0 %v579
    %v581 = vpop.xlane.xlu0 %580
    %v582 = vsel %vm566, %v578, 0.0
    %583 = vadd.xlane.f32.xlu0 %v582
    %v584 = vpop.xlane.xlu0 %583
    %v585 = vrcp.pop %v581
    %v586 = vrcp.pop %v584
    %v587 = vmul.f32 %v576, %v585
    %v588 = vmul.f32 %v578, %v586
    %v590 = vsel %vm566, %v587, 0
    %v593 = vsel %vm566, %v588, 0
    %595 = vmatprep.subr.mxu0 0.0
    %596 = vmatpush1.msra.mxu0 %v321
    %597 = vmatprep.subr.mxu0 0.0
    %598 = vmatpush1.msra.mxu0 %v326
    %599 = vmatprep.subr.mxu0 0.0
    %600 = vmatpush1.msra.mxu0 0.0
    %601 = vmatprep.subr.mxu0 0.0
    %602 = vmatpush1.msra.mxu0 0.0
    %603 = vmatprep.subr.mxu0 0.0
    %604 = vmatpush1.msra.mxu0 0.0
    %605 = vmatprep.subr.mxu0 0.0
    %606 = vmatpush1.msra.mxu0 0.0
    %607 = vmatprep.subr.mxu0 0.0
    %608 = vmatpush1.msra.mxu0 0.0
    %609 = vmatprep.subr.mxu0 0.0
    %610 = vmatpush1.msra.mxu0 0.0
    %611 = vmatprep.subr.mxu0 0.0
    %612 = vmatpush1.msra.mxu0 0.0
    %613 = vmatprep.subr.mxu0 0.0
    %614 = vmatpush1.msra.mxu0 0.0
    %615 = vmatprep.subr.mxu0 0.0
    %616 = vmatpush1.msra.mxu0 0.0
    %617 = vmatprep.subr.mxu0 0.0
    %618 = vmatpush1.msra.mxu0 0.0
    %619 = vmatprep.subr.mxu0 0.0
    %620 = vmatpush1.msra.mxu0 0.0
    %621 = vmatprep.subr.mxu0 0.0
    %622 = vmatpush1.msra.mxu0 0.0
    %623 = vmatprep.subr.mxu0 0.0
    %624 = vmatpush1.msra.mxu0 0.0
    %625 = vmatprep.subr.mxu0 0.0
    %626 = vmatpush1.msra.mxu0 0.0
    %627 = vmatprep.subr.mxu0 0.0
    %628 = vmatpush1.msra.mxu0 0.0
    %629 = vmatprep.subr.mxu0 0.0
    %630 = vmatpush1.msra.mxu0 0.0
    %631 = vmatprep.subr.mxu0 0.0
    %632 = vmatpush1.msra.mxu0 0.0
    %633 = vmatprep.subr.mxu0 0.0
    %634 = vmatpush1.msra.mxu0 0.0
    %635 = vmatprep.subr.mxu0 0.0
    %636 = vmatpush1.msra.mxu0 0.0
    %637 = vmatprep.subr.mxu0 0.0
    %638 = vmatpush1.msra.mxu0 0.0
    %639 = vmatprep.subr.mxu0 0.0
    %640 = vmatpush1.msra.mxu0 0.0
    %641 = vmatprep.subr.mxu0 0.0
    %642 = vmatpush1.msra.mxu0 0.0
    %643 = vmatprep.subr.mxu0 0.0
    %644 = vmatpush1.msra.mxu0 0.0
    %645 = vmatprep.subr.mxu0 0.0
    %646 = vmatpush1.msra.mxu0 0.0
    %647 = vmatprep.subr.mxu0 0.0
    %648 = vmatpush1.msra.mxu0 0.0
    %649 = vmatprep.subr.mxu0 0.0
    %650 = vmatpush1.msra.mxu0 0.0
    %651 = vmatprep.subr.mxu0 0.0
    %652 = vmatpush1.msra.mxu0 0.0
    %653 = vmatprep.subr.mxu0 0.0
    %654 = vmatpush1.msra.mxu0 0.0
    %655 = vmatprep.subr.mxu0 0.0
    %656 = vmatpush1.msra.mxu0 0.0
    %657 = vmatprep.subr.mxu0 0.0
    %658 = vmatpush1.msra.mxu0 0.0
    %659 = vmatprep.mubr.f32.mxu0 0.0
    %660 = vmatmul.mubr.f32.gmra.mrb[0].mxu0 %v590
    %v661 = vpop.f32.mrb[0].mxu0
    %v662 = vadd.f32 0.0, %v661
    %v663 = vpop.f32.mrb[0].mxu0
    %664 = vmatprep.mubr.f32.mxu0 0.0
    %665 = vmatmul.mubr.f32.gmra.mrb[0].mxu0 %v593
    %v666 = vpop.f32.mrb[0].mxu0
    %v667 = vadd.f32 0.0, %v666
    %v668 = vpop.f32.mrb[0].mxu0
    %669 = vdwg.mxu0
    %v670 = vlaneseq
    %v671 = vshrl.u32 %v670, 7
    %v672 = vsub.s32 0, %v671
    %v673 = vrot.slane %v203, %v672
    %v675 = vsel %vm247, %v662, 0
    %v678 = vsel %vm247, %v667, 0
    %680 = vmatprep.subr.mxu0 0.0
    %681 = vmatpush1.msra.mxu0 %v223
    %682 = vmatprep.subr.mxu0 0.0
    %683 = vmatpush1.msra.mxu0 %v224
    %684 = vmatprep.subr.mxu0 0.0
    %685 = vmatpush1.msra.mxu0 %v225
    %686 = vmatprep.subr.mxu0 0.0
    %687 = vmatpush1.msra.mxu0 %v226
    %688 = vmatprep.subr.mxu0 0.0
    %689 = vmatpush1.msra.mxu0 0.0
    %690 = vmatprep.subr.mxu0 0.0
    %691 = vmatpush1.msra.mxu0 0.0
    %692 = vmatprep.subr.mxu0 0.0
    %693 = vmatpush1.msra.mxu0 0.0
    %694 = vmatprep.subr.mxu0 0.0
    %695 = vmatpush1.msra.mxu0 0.0
    %696 = vmatprep.subr.mxu0 0.0
    %697 = vmatpush1.msra.mxu0 0.0
    %698 = vmatprep.subr.mxu0 0.0
    %699 = vmatpush1.msra.mxu0 0.0
    %700 = vmatprep.subr.mxu0 0.0
    %701 = vmatpush1.msra.mxu0 0.0
    %702 = vmatprep.subr.mxu0 0.0
    %703 = vmatpush1.msra.mxu0 0.0
    %704 = vmatprep.subr.mxu0 0.0
    %705 = vmatpush1.msra.mxu0 0.0
    %706 = vmatprep.subr.mxu0 0.0
    %707 = vmatpush1.msra.mxu0 0.0
    %708 = vmatprep.subr.mxu0 0.0
    %709 = vmatpush1.msra.mxu0 0.0
    %710 = vmatprep.subr.mxu0 0.0
    %711 = vmatpush1.msra.mxu0 0.0
    %712 = vmatprep.subr.mxu0 0.0
    %713 = vmatpush1.msra.mxu0 0.0
    %714 = vmatprep.subr.mxu0 0.0
    %715 = vmatpush1.msra.mxu0 0.0
    %716 = vmatprep.subr.mxu0 0.0
    %717 = vmatpush1.msra.mxu0 0.0
    %718 = vmatprep.subr.mxu0 0.0
    %719 = vmatpush1.msra.mxu0 0.0
    %720 = vmatprep.subr.mxu0 0.0
    %721 = vmatpush1.msra.mxu0 0.0
    %722 = vmatprep.subr.mxu0 0.0
    %723 = vmatpush1.msra.mxu0 0.0
    %724 = vmatprep.subr.mxu0 0.0
    %725 = vmatpush1.msra.mxu0 0.0
    %726 = vmatprep.subr.mxu0 0.0
    %727 = vmatpush1.msra.mxu0 0.0
    %728 = vmatprep.subr.mxu0 0.0
    %729 = vmatpush1.msra.mxu0 0.0
    %730 = vmatprep.subr.mxu0 0.0
    %731 = vmatpush1.msra.mxu0 0.0
    %732 = vmatprep.subr.mxu0 0.0
    %733 = vmatpush1.msra.mxu0 0.0
    %734 = vmatprep.subr.mxu0 0.0
    %735 = vmatpush1.msra.mxu0 0.0
    %736 = vmatprep.subr.mxu0 0.0
    %737 = vmatpush1.msra.mxu0 0.0
    %738 = vmatprep.subr.mxu0 0.0
    %739 = vmatpush1.msra.mxu0 0.0
    %740 = vmatprep.subr.mxu0 0.0
    %741 = vmatpush1.msra.mxu0 0.0
    %742 = vmatprep.subr.mxu0 0.0
    %743 = vmatpush1.msra.mxu0 0.0
    %744 = vmatprep.mubr.f32.mxu0 0.0
    %745 = vmatmul.mubr.f32.gmra.mrb[0].mxu0 %v675
    %v746 = vpop.f32.mrb[0].mxu0
    %v747 = vadd.f32 %v673, %v746
    %v748 = vpop.f32.mrb[0].mxu0
    %749 = vmatprep.mubr.f32.mxu0 0.0
    %750 = vmatmul.mubr.f32.gmra.mrb[0].mxu0 %v678
    %v751 = vpop.f32.mrb[0].mxu0
    %v752 = vadd.f32 %v673, %v751
    %v753 = vpop.f32.mrb[0].mxu0
    %754 = vdwg.mxu0
    %v755 = vadd.f32 %v747, %v199
    %v756 = vadd.f32 %v752, %v200
    %v757 = vsel %vm247, %v755, 0.0
    %758 = vadd.xlane.f32.xlu0 %v757
    %v759 = vpop.xlane.xlu0 %758
    %v760 = vsel %vm247, %v756, 0.0
    %761 = vadd.xlane.f32.xlu0 %v760
    %v762 = vpop.xlane.xlu0 %761
    %v763 = vrcp.pop 32.0
    %v764 = vmul.f32 %v759, %v763
    %v765 = vmul.f32 %v762, %v763
    %v766 = vmul.f32 %v755, %v755
    %v767 = vmul.f32 %v756, %v756
    %v768 = vsel %vm247, %v766, 0.0
    %769 = vadd.xlane.f32.xlu0 %v768
    %v770 = vpop.xlane.xlu0 %769
    %v771 = vsel %vm247, %v767, 0.0
    %772 = vadd.xlane.f32.xlu0 %v771
    %v773 = vpop.xlane.xlu0 %772
    %v774 = vmul.f32 %v770, %v763
    %v775 = vmul.f32 %v773, %v763
    %v776 = vmul.f32 %v764, %v764
    %v777 = vmul.f32 %v765, %v765
    %v778 = vsub.f32 %v774, %v776
    %v779 = vsub.f32 %v775, %v777
    %v780 = vsub.f32 %v755, %v764
    %v781 = vsub.f32 %v756, %v765
    %v782 = vadd.f32 %v778, 1e-05
    %v783 = vadd.f32 %v779, 1e-05
    %v784 = vrsqrt.pop %v782
    %v785 = vrsqrt.pop %v783
    %v786 = vmul.f32 %v780, %v784
    %v787 = vmul.f32 %v781, %v785
    %v788 = vlaneseq
    %v789 = vshrl.u32 %v788, 7
    %v790 = vsub.s32 2, %v789
    %v791 = vrot.slane %v203, %v790
    %v792 = vmul.f32 %v786, %v791
    %v793 = vmul.f32 %v787, %v791
    %v794 = vlaneseq
    %v795 = vshrl.u32 %v794, 7
    %v796 = vsub.s32 3, %v795
    %v797 = vrot.slane %v203, %v796
    %v798 = vadd.f32 %v792, %v797
    %v799 = vadd.f32 %v793, %v797
    %v800 = vlaneseq
    %v801 = vshrl.u32 %v800, 7
    %v802 = vsub.s32 0, %v801
    %v803 = vrot.slane %v205, %v802
    %v805 = vsel %vm247, %v798, 0
    %v808 = vsel %vm247, %v799, 0
    %810 = vmatprep.subr.mxu0 0.0
    %811 = vmatpush1.msra.mxu0 %v227
    %812 = vmatprep.subr.mxu0 0.0
    %813 = vmatpush1.msra.mxu0 %v228
    %814 = vmatprep.subr.mxu0 0.0
    %815 = vmatpush1.msra.mxu0 %v229
    %816 = vmatprep.subr.mxu0 0.0
    %817 = vmatpush1.msra.mxu0 %v230
    %818 = vmatprep.subr.mxu0 0.0
    %819 = vmatpush1.msra.mxu0 0.0
    %820 = vmatprep.subr.mxu0 0.0
    %821 = vmatpush1.msra.mxu0 0.0
    %822 = vmatprep.subr.mxu0 0.0
    %823 = vmatpush1.msra.mxu0 0.0
    %824 = vmatprep.subr.mxu0 0.0
    %825 = vmatpush1.msra.mxu0 0.0
    %826 = vmatprep.subr.mxu0 0.0
    %827 = vmatpush1.msra.mxu0 0.0
    %828 = vmatprep.subr.mxu0 0.0
    %829 = vmatpush1.msra.mxu0 0.0
    %830 = vmatprep.subr.mxu0 0.0
    %831 = vmatpush1.msra.mxu0 0.0
    %832 = vmatprep.subr.mxu0 0.0
    %833 = vmatpush1.msra.mxu0 0.0
    %834 = vmatprep.subr.mxu0 0.0
    %835 = vmatpush1.msra.mxu0 0.0
    %836 = vmatprep.subr.mxu0 0.0
    %837 = vmatpush1.msra.mxu0 0.0
    %838 = vmatprep.subr.mxu0 0.0
    %839 = vmatpush1.msra.mxu0 0.0
    %840 = vmatprep.subr.mxu0 0.0
    %841 = vmatpush1.msra.mxu0 0.0
    %842 = vmatprep.subr.mxu0 0.0
    %843 = vmatpush1.msra.mxu0 0.0
    %844 = vmatprep.subr.mxu0 0.0
    %845 = vmatpush1.msra.mxu0 0.0
    %846 = vmatprep.subr.mxu0 0.0
    %847 = vmatpush1.msra.mxu0 0.0
    %848 = vmatprep.subr.mxu0 0.0
    %849 = vmatpush1.msra.mxu0 0.0
    %850 = vmatprep.subr.mxu0 0.0
    %851 = vmatpush1.msra.mxu0 0.0
    %852 = vmatprep.subr.mxu0 0.0
    %853 = vmatpush1.msra.mxu0 0.0
    %854 = vmatprep.subr.mxu0 0.0
    %855 = vmatpush1.msra.mxu0 0.0
    %856 = vmatprep.subr.mxu0 0.0
    %857 = vmatpush1.msra.mxu0 0.0
    %858 = vmatprep.subr.mxu0 0.0
    %859 = vmatpush1.msra.mxu0 0.0
    %860 = vmatprep.subr.mxu0 0.0
    %861 = vmatpush1.msra.mxu0 0.0
    %862 = vmatprep.subr.mxu0 0.0
    %863 = vmatpush1.msra.mxu0 0.0
    %864 = vmatprep.subr.mxu0 0.0
    %865 = vmatpush1.msra.mxu0 0.0
    %866 = vmatprep.subr.mxu0 0.0
    %867 = vmatpush1.msra.mxu0 0.0
    %868 = vmatprep.subr.mxu0 0.0
    %869 = vmatpush1.msra.mxu0 0.0
    %870 = vmatprep.subr.mxu0 0.0
    %871 = vmatpush1.msra.mxu0 0.0
    %872 = vmatprep.subr.mxu0 0.0
    %873 = vmatpush1.msra.mxu0 0.0
    %874 = vmatprep.mubr.f32.mxu0 0.0
    %875 = vmatmul.mubr.f32.gmra.mrb[0].mxu0 %v805
    %v876 = vpop.f32.mrb[0].mxu0
    %v877 = vadd.f32 %v803, %v876
    %v878 = vpop.f32.mrb[0].mxu0
    %879 = vmatprep.mubr.f32.mxu0 0.0
    %880 = vmatmul.mubr.f32.gmra.mrb[0].mxu0 %v808
    %v881 = vpop.f32.mrb[0].mxu0
    %v882 = vadd.f32 %v803, %v881
    %v883 = vpop.f32.mrb[0].mxu0
    %884 = vdwg.mxu0
    %v885 = vmax.f32 %v877, 0.0
    %v886 = vmax.f32 %v882, 0.0
    %v887 = vlaneseq
    %v888 = vshrl.u32 %v887, 7
    %v889 = vsub.s32 1, %v888
    %v890 = vrot.slane %v203, %v889
    %891 = vmatprep.subr.mxu0 0.0
    %892 = vmatpush1.msra.mxu0 %v231
    %893 = vmatprep.subr.mxu0 0.0
    %894 = vmatpush1.msra.mxu0 %v232
    %895 = vmatprep.subr.mxu0 0.0
    %896 = vmatpush1.msra.mxu0 %v233
    %897 = vmatprep.subr.mxu0 0.0
    %898 = vmatpush1.msra.mxu0 %v234
    %899 = vmatprep.subr.mxu0 0.0
    %900 = vmatpush1.msra.mxu0 %v235
    %901 = vmatprep.subr.mxu0 0.0
    %902 = vmatpush1.msra.mxu0 %v236
    %903 = vmatprep.subr.mxu0 0.0
    %904 = vmatpush1.msra.mxu0 %v237
    %905 = vmatprep.subr.mxu0 0.0
    %906 = vmatpush1.msra.mxu0 %v238
    %907 = vmatprep.subr.mxu0 0.0
    %908 = vmatpush1.msra.mxu0 %v239
    %909 = vmatprep.subr.mxu0 0.0
    %910 = vmatpush1.msra.mxu0 %v240
    %911 = vmatprep.subr.mxu0 0.0
    %912 = vmatpush1.msra.mxu0 %v241
    %913 = vmatprep.subr.mxu0 0.0
    %914 = vmatpush1.msra.mxu0 %v242
    %915 = vmatprep.subr.mxu0 0.0
    %916 = vmatpush1.msra.mxu0 %v243
    %917 = vmatprep.subr.mxu0 0.0
    %918 = vmatpush1.msra.mxu0 %v244
    %919 = vmatprep.subr.mxu0 0.0
    %920 = vmatpush1.msra.mxu0 %v245
    %921 = vmatprep.subr.mxu0 0.0
    %922 = vmatpush1.msra.mxu0 %v246
    %923 = vmatprep.subr.mxu0 0.0
    %924 = vmatpush1.msra.mxu0 0.0
    %925 = vmatprep.subr.mxu0 0.0
    %926 = vmatpush1.msra.mxu0 0.0
    %927 = vmatprep.subr.mxu0 0.0
    %928 = vmatpush1.msra.mxu0 0.0
    %929 = vmatprep.subr.mxu0 0.0
    %930 = vmatpush1.msra.mxu0 0.0
    %931 = vmatprep.subr.mxu0 0.0
    %932 = vmatpush1.msra.mxu0 0.0
    %933 = vmatprep.subr.mxu0 0.0
    %934 = vmatpush1.msra.mxu0 0.0
    %935 = vmatprep.subr.mxu0 0.0
    %936 = vmatpush1.msra.mxu0 0.0
    %937 = vmatprep.subr.mxu0 0.0
    %938 = vmatpush1.msra.mxu0 0.0
    %939 = vmatprep.subr.mxu0 0.0
    %940 = vmatpush1.msra.mxu0 0.0
    %941 = vmatprep.subr.mxu0 0.0
    %942 = vmatpush1.msra.mxu0 0.0
    %943 = vmatprep.subr.mxu0 0.0
    %944 = vmatpush1.msra.mxu0 0.0
    %945 = vmatprep.subr.mxu0 0.0
    %946 = vmatpush1.msra.mxu0 0.0
    %947 = vmatprep.subr.mxu0 0.0
    %948 = vmatpush1.msra.mxu0 0.0
    %949 = vmatprep.subr.mxu0 0.0
    %950 = vmatpush1.msra.mxu0 0.0
    %951 = vmatprep.subr.mxu0 0.0
    %952 = vmatpush1.msra.mxu0 0.0
    %953 = vmatprep.subr.mxu0 0.0
    %954 = vmatpush1.msra.mxu0 0.0
    %955 = vmatprep.mubr.f32.mxu0 0.0
    %956 = vmatmul.mubr.f32.gmra.mrb[0].mxu0 %v885
    %v957 = vpop.f32.mrb[0].mxu0
    %v958 = vadd.f32 %v890, %v957
    %v959 = vpop.f32.mrb[0].mxu0
    %960 = vmatprep.mubr.f32.mxu0 0.0
    %961 = vmatmul.mubr.f32.gmra.mrb[0].mxu0 %v886
    %v962 = vpop.f32.mrb[0].mxu0
    %v963 = vadd.f32 %v890, %v962
    %v964 = vpop.f32.mrb[0].mxu0
    %965 = vdwg.mxu0
    %v966 = vadd.f32 %v958, %v798
    %v967 = vadd.f32 %v963, %v799
    %v968 = vsel %vm247, %v966, 0.0
    %969 = vadd.xlane.f32.xlu0 %v968
    %v970 = vpop.xlane.xlu0 %969
    %v971 = vsel %vm247, %v967, 0.0
    %972 = vadd.xlane.f32.xlu0 %v971
    %v973 = vpop.xlane.xlu0 %972
    %v974 = vmul.f32 %v970, %v763
    %v975 = vmul.f32 %v973, %v763
    %v976 = vmul.f32 %v966, %v966
    %v977 = vmul.f32 %v967, %v967
    %v978 = vsel %vm247, %v976, 0.0
    %979 = vadd.xlane.f32.xlu0 %v978
    %v980 = vpop.xlane.xlu0 %979
    %v981 = vsel %vm247, %v977, 0.0
    %982 = vadd.xlane.f32.xlu0 %v981
    %v983 = vpop.xlane.xlu0 %982
    %v984 = vmul.f32 %v980, %v763
    %v985 = vmul.f32 %v983, %v763
    %v986 = vmul.f32 %v974, %v974
    %v987 = vmul.f32 %v975, %v975
    %v988 = vsub.f32 %v984, %v986
    %v989 = vsub.f32 %v985, %v987
    %v990 = vsub.f32 %v966, %v974
    %v991 = vsub.f32 %v967, %v975
    %v992 = vadd.f32 %v988, 1e-05
    %v993 = vadd.f32 %v989, 1e-05
    %v994 = vrsqrt.pop %v992
    %v995 = vrsqrt.pop %v993
    %v996 = vmul.f32 %v990, %v994
    %v997 = vmul.f32 %v991, %v995
    %v998 = vlaneseq
    %v999 = vshrl.u32 %v998, 7
    %v1000 = vsub.s32 4, %v999
    %v1001 = vrot.slane %v203, %v1000
    %v1002 = vmul.f32 %v996, %v1001
    %v1003 = vmul.f32 %v997, %v1001
    %v1004 = vlaneseq
    %v1005 = vshrl.u32 %v1004, 7
    %v1006 = vsub.s32 5, %v1005
    %v1007 = vrot.slane %v203, %v1006
    %v1008 = vadd.f32 %v1002, %v1007
    %v1009 = vadd.f32 %v1003, %v1007
    %v1010 = vld [vmem:[%s5] sm:$0xff]
    %v1011 = vld [vmem:[%s5 + $0x8] sm:$0xff]
    %s1012 = scalar_lea.vmem %s6, 128
    %v1013 = vld [vmem:[%s1012] sm:$0xff]
    %v1014 = vld [vmem:[%s1012 + $0x8] sm:$0xff]
    %v1015 = vld [vmem:[%s1012 + $0x10] sm:$0xff]
    %v1016 = vld [vmem:[%s1012 + $0x18] sm:$0xff]
    %s1017 = scalar_lea.vmem %s6, 160
    %v1018 = vld [vmem:[%s1017] sm:$0xff]
    %v1019 = vld [vmem:[%s1017 + $0x8] sm:$0xff]
    %v1020 = vld [vmem:[%s1017 + $0x10] sm:$0xff]
    %v1021 = vld [vmem:[%s1017 + $0x18] sm:$0xff]
    %s1022 = scalar_lea.vmem %s6, 192
    %v1023 = vld [vmem:[%s1022] sm:$0xff]
    %v1024 = vld [vmem:[%s1022 + $0x8] sm:$0xff]
    %v1025 = vld [vmem:[%s1022 + $0x10] sm:$0xff]
    %v1026 = vld [vmem:[%s1022 + $0x18] sm:$0xff]
    %s1027 = scalar_lea.vmem %s6, 224
    %v1028 = vld [vmem:[%s1027] sm:$0xff]
    %v1029 = vld [vmem:[%s1027 + $0x8] sm:$0xff]
    %v1030 = vld [vmem:[%s1027 + $0x10] sm:$0xff]
    %v1031 = vld [vmem:[%s1027 + $0x18] sm:$0xff]
    %s1032 = scalar_lea.vmem %s7, 32
    %v1033 = vld [vmem:[%s1032] sm:$0xff]
    %v1034 = vld [vmem:[%s1032 + $0x8] sm:$0xff]
    %v1035 = vld [vmem:[%s1032 + $0x10] sm:$0xff]
    %v1036 = vld [vmem:[%s1032 + $0x18] sm:$0xff]
    %s1037 = scalar_lea.vmem %s8, 128
    %v1038 = vld [vmem:[%s1037] sm:$0xff]
    %v1039 = vld [vmem:[%s1037 + $0x8] sm:$0xff]
    %v1040 = vld [vmem:[%s1037 + $0x10] sm:$0xff]
    %v1041 = vld [vmem:[%s1037 + $0x18] sm:$0xff]
    %v1042 = vld [vmem:[%s1037 + $0x20] sm:$0xff]
    %v1043 = vld [vmem:[%s1037 + $0x28] sm:$0xff]
    %v1044 = vld [vmem:[%s1037 + $0x30] sm:$0xff]
    %v1045 = vld [vmem:[%s1037 + $0x38] sm:$0xff]
    %v1046 = vld [vmem:[%s1037 + $0x40] sm:$0xff]
    %v1047 = vld [vmem:[%s1037 + $0x48] sm:$0xff]
    %v1048 = vld [vmem:[%s1037 + $0x50] sm:$0xff]
    %v1049 = vld [vmem:[%s1037 + $0x58] sm:$0xff]
    %v1050 = vld [vmem:[%s1037 + $0x60] sm:$0xff]
    %v1051 = vld [vmem:[%s1037 + $0x68] sm:$0xff]
    %v1052 = vld [vmem:[%s1037 + $0x70] sm:$0xff]
    %v1053 = vld [vmem:[%s1037 + $0x78] sm:$0xff]
    %v1055 = vsel %vm247, %v1008, 0
    %v1058 = vsel %vm247, %v1009, 0
    %1060 = vmatprep.subr.mxu0 0.0
    %1061 = vmatpush1.msra.mxu0 %v1013
    %1062 = vmatprep.subr.mxu0 0.0
    %1063 = vmatpush1.msra.mxu0 %v1014
    %1064 = vmatprep.subr.mxu0 0.0
    %1065 = vmatpush1.msra.mxu0 %v1015
    %1066 = vmatprep.subr.mxu0 0.0
    %1067 = vmatpush1.msra.mxu0 %v1016
    %1068 = vmatprep.subr.mxu0 0.0
    %1069 = vmatpush1.msra.mxu0 0.0
    %1070 = vmatprep.subr.mxu0 0.0
    %1071 = vmatpush1.msra.mxu0 0.0
    %1072 = vmatprep.subr.mxu0 0.0
    %1073 = vmatpush1.msra.mxu0 0.0
    %1074 = vmatprep.subr.mxu0 0.0
    %1075 = vmatpush1.msra.mxu0 0.0
    %1076 = vmatprep.subr.mxu0 0.0
    %1077 = vmatpush1.msra.mxu0 0.0
    %1078 = vmatprep.subr.mxu0 0.0
    %1079 = vmatpush1.msra.mxu0 0.0
    %1080 = vmatprep.subr.mxu0 0.0
    %1081 = vmatpush1.msra.mxu0 0.0
    %1082 = vmatprep.subr.mxu0 0.0
    %1083 = vmatpush1.msra.mxu0 0.0
    %1084 = vmatprep.subr.mxu0 0.0
    %1085 = vmatpush1.msra.mxu0 0.0
    %1086 = vmatprep.subr.mxu0 0.0
    %1087 = vmatpush1.msra.mxu0 0.0
    %1088 = vmatprep.subr.mxu0 0.0
    %1089 = vmatpush1.msra.mxu0 0.0
    %1090 = vmatprep.subr.mxu0 0.0
    %1091 = vmatpush1.msra.mxu0 0.0
    %1092 = vmatprep.subr.mxu0 0.0
    %1093 = vmatpush1.msra.mxu0 0.0
    %1094 = vmatprep.subr.mxu0 0.0
    %1095 = vmatpush1.msra.mxu0 0.0
    %1096 = vmatprep.subr.mxu0 0.0
    %1097 = vmatpush1.msra.mxu0 0.0
    %1098 = vmatprep.subr.mxu0 0.0
    %1099 = vmatpush1.msra.mxu0 0.0
    %1100 = vmatprep.subr.mxu0 0.0
    %1101 = vmatpush1.msra.mxu0 0.0
    %1102 = vmatprep.subr.mxu0 0.0
    %1103 = vmatpush1.msra.mxu0 0.0
    %1104 = vmatprep.subr.mxu0 0.0
    %1105 = vmatpush1.msra.mxu0 0.0
    %1106 = vmatprep.subr.mxu0 0.0
    %1107 = vmatpush1.msra.mxu0 0.0
    %1108 = vmatprep.subr.mxu0 0.0
    %1109 = vmatpush1.msra.mxu0 0.0
    %1110 = vmatprep.subr.mxu0 0.0
    %1111 = vmatpush1.msra.mxu0 0.0
    %1112 = vmatprep.subr.mxu0 0.0
    %1113 = vmatpush1.msra.mxu0 0.0
    %1114 = vmatprep.subr.mxu0 0.0
    %1115 = vmatpush1.msra.mxu0 0.0
    %1116 = vmatprep.subr.mxu0 0.0
    %1117 = vmatpush1.msra.mxu0 0.0
    %1118 = vmatprep.subr.mxu0 0.0
    %1119 = vmatpush1.msra.mxu0 0.0
    %1120 = vmatprep.subr.mxu0 0.0
    %1121 = vmatpush1.msra.mxu0 0.0
    %1122 = vmatprep.subr.mxu0 0.0
    %1123 = vmatpush1.msra.mxu0 0.0
    %1124 = vmatprep.mubr.f32.mxu0 0.0
    %1125 = vmatmul.mubr.f32.gmra.mrb[0].mxu0 %v1055
    %v1126 = vpop.f32.mrb[0].mxu0
    %v1127 = vadd.f32 0.0, %v1126
    %v1128 = vpop.f32.mrb[0].mxu0
    %1129 = vmatprep.mubr.f32.mxu0 0.0
    %1130 = vmatmul.mubr.f32.gmra.mrb[0].mxu0 %v1058
    %v1131 = vpop.f32.mrb[0].mxu0
    %v1132 = vadd.f32 0.0, %v1131
    %v1133 = vpop.f32.mrb[0].mxu0
    %1134 = vdwg.mxu0
    %1135 = vmatprep.subr.mxu0 0.0
    %1136 = vmatpush1.msra.mxu0 %v1018
    %1137 = vmatprep.subr.mxu0 0.0
    %1138 = vmatpush1.msra.mxu0 %v1019
    %1139 = vmatprep.subr.mxu0 0.0
    %1140 = vmatpush1.msra.mxu0 %v1020
    %1141 = vmatprep.subr.mxu0 0.0
    %1142 = vmatpush1.msra.mxu0 %v1021
    %1143 = vmatprep.subr.mxu0 0.0
    %1144 = vmatpush1.msra.mxu0 0.0
    %1145 = vmatprep.subr.mxu0 0.0
    %1146 = vmatpush1.msra.mxu0 0.0
    %1147 = vmatprep.subr.mxu0 0.0
    %1148 = vmatpush1.msra.mxu0 0.0
    %1149 = vmatprep.subr.mxu0 0.0
    %1150 = vmatpush1.msra.mxu0 0.0
    %1151 = vmatprep.subr.mxu0 0.0
    %1152 = vmatpush1.msra.mxu0 0.0
    %1153 = vmatprep.subr.mxu0 0.0
    %1154 = vmatpush1.msra.mxu0 0.0
    %1155 = vmatprep.subr.mxu0 0.0
    %1156 = vmatpush1.msra.mxu0 0.0
    %1157 = vmatprep.subr.mxu0 0.0
    %1158 = vmatpush1.msra.mxu0 0.0
    %1159 = vmatprep.subr.mxu0 0.0
    %1160 = vmatpush1.msra.mxu0 0.0
    %1161 = vmatprep.subr.mxu0 0.0
    %1162 = vmatpush1.msra.mxu0 0.0
    %1163 = vmatprep.subr.mxu0 0.0
    %1164 = vmatpush1.msra.mxu0 0.0
    %1165 = vmatprep.subr.mxu0 0.0
    %1166 = vmatpush1.msra.mxu0 0.0
    %1167 = vmatprep.subr.mxu0 0.0
    %1168 = vmatpush1.msra.mxu0 0.0
    %1169 = vmatprep.subr.mxu0 0.0
    %1170 = vmatpush1.msra.mxu0 0.0
    %1171 = vmatprep.subr.mxu0 0.0
    %1172 = vmatpush1.msra.mxu0 0.0
    %1173 = vmatprep.subr.mxu0 0.0
    %1174 = vmatpush1.msra.mxu0 0.0
    %1175 = vmatprep.subr.mxu0 0.0
    %1176 = vmatpush1.msra.mxu0 0.0
    %1177 = vmatprep.subr.mxu0 0.0
    %1178 = vmatpush1.msra.mxu0 0.0
    %1179 = vmatprep.subr.mxu0 0.0
    %1180 = vmatpush1.msra.mxu0 0.0
    %1181 = vmatprep.subr.mxu0 0.0
    %1182 = vmatpush1.msra.mxu0 0.0
    %1183 = vmatprep.subr.mxu0 0.0
    %1184 = vmatpush1.msra.mxu0 0.0
    %1185 = vmatprep.subr.mxu0 0.0
    %1186 = vmatpush1.msra.mxu0 0.0
    %1187 = vmatprep.subr.mxu0 0.0
    %1188 = vmatpush1.msra.mxu0 0.0
    %1189 = vmatprep.subr.mxu0 0.0
    %1190 = vmatpush1.msra.mxu0 0.0
    %1191 = vmatprep.subr.mxu0 0.0
    %1192 = vmatpush1.msra.mxu0 0.0
    %1193 = vmatprep.subr.mxu0 0.0
    %1194 = vmatpush1.msra.mxu0 0.0
    %1195 = vmatprep.subr.mxu0 0.0
    %1196 = vmatpush1.msra.mxu0 0.0
    %1197 = vmatprep.subr.mxu0 0.0
    %1198 = vmatpush1.msra.mxu0 0.0
    %1199 = vmatprep.mubr.f32.mxu0 0.0
    %1200 = vmatmul.mubr.f32.gmra.mrb[0].mxu0 %v1055
    %v1201 = vpop.f32.mrb[0].mxu0
    %v1202 = vadd.f32 0.0, %v1201
    %v1203 = vpop.f32.mrb[0].mxu0
    %1204 = vmatprep.mubr.f32.mxu0 0.0
    %1205 = vmatmul.mubr.f32.gmra.mrb[0].mxu0 %v1058
    %v1206 = vpop.f32.mrb[0].mxu0
    %v1207 = vadd.f32 0.0, %v1206
    %v1208 = vpop.f32.mrb[0].mxu0
    %1209 = vdwg.mxu0
    %v1211 = vsel %vm247, %v201, 0
    %v1214 = vsel %vm247, %v202, 0
    %1216 = vmatprep.subr.mxu0 0.0
    %1217 = vmatpush1.msra.mxu0 %v1023
    %1218 = vmatprep.subr.mxu0 0.0
    %1219 = vmatpush1.msra.mxu0 %v1024
    %1220 = vmatprep.subr.mxu0 0.0
    %1221 = vmatpush1.msra.mxu0 %v1025
    %1222 = vmatprep.subr.mxu0 0.0
    %1223 = vmatpush1.msra.mxu0 %v1026
    %1224 = vmatprep.subr.mxu0 0.0
    %1225 = vmatpush1.msra.mxu0 0.0
    %1226 = vmatprep.subr.mxu0 0.0
    %1227 = vmatpush1.msra.mxu0 0.0
    %1228 = vmatprep.subr.mxu0 0.0
    %1229 = vmatpush1.msra.mxu0 0.0
    %1230 = vmatprep.subr.mxu0 0.0
    %1231 = vmatpush1.msra.mxu0 0.0
    %1232 = vmatprep.subr.mxu0 0.0
    %1233 = vmatpush1.msra.mxu0 0.0
    %1234 = vmatprep.subr.mxu0 0.0
    %1235 = vmatpush1.msra.mxu0 0.0
    %1236 = vmatprep.subr.mxu0 0.0
    %1237 = vmatpush1.msra.mxu0 0.0
    %1238 = vmatprep.subr.mxu0 0.0
    %1239 = vmatpush1.msra.mxu0 0.0
    %1240 = vmatprep.subr.mxu0 0.0
    %1241 = vmatpush1.msra.mxu0 0.0
    %1242 = vmatprep.subr.mxu0 0.0
    %1243 = vmatpush1.msra.mxu0 0.0
    %1244 = vmatprep.subr.mxu0 0.0
    %1245 = vmatpush1.msra.mxu0 0.0
    %1246 = vmatprep.subr.mxu0 0.0
    %1247 = vmatpush1.msra.mxu0 0.0
    %1248 = vmatprep.subr.mxu0 0.0
    %1249 = vmatpush1.msra.mxu0 0.0
    %1250 = vmatprep.subr.mxu0 0.0
    %1251 = vmatpush1.msra.mxu0 0.0
    %1252 = vmatprep.subr.mxu0 0.0
    %1253 = vmatpush1.msra.mxu0 0.0
    %1254 = vmatprep.subr.mxu0 0.0
    %1255 = vmatpush1.msra.mxu0 0.0
    %1256 = vmatprep.subr.mxu0 0.0
    %1257 = vmatpush1.msra.mxu0 0.0
    %1258 = vmatprep.subr.mxu0 0.0
    %1259 = vmatpush1.msra.mxu0 0.0
    %1260 = vmatprep.subr.mxu0 0.0
    %1261 = vmatpush1.msra.mxu0 0.0
    %1262 = vmatprep.subr.mxu0 0.0
    %1263 = vmatpush1.msra.mxu0 0.0
    %1264 = vmatprep.subr.mxu0 0.0
    %1265 = vmatpush1.msra.mxu0 0.0
    %1266 = vmatprep.subr.mxu0 0.0
    %1267 = vmatpush1.msra.mxu0 0.0
    %1268 = vmatprep.subr.mxu0 0.0
    %1269 = vmatpush1.msra.mxu0 0.0
    %1270 = vmatprep.subr.mxu0 0.0
    %1271 = vmatpush1.msra.mxu0 0.0
    %1272 = vmatprep.subr.mxu0 0.0
    %1273 = vmatpush1.msra.mxu0 0.0
    %1274 = vmatprep.subr.mxu0 0.0
    %1275 = vmatpush1.msra.mxu0 0.0
    %1276 = vmatprep.subr.mxu0 0.0
    %1277 = vmatpush1.msra.mxu0 0.0
    %1278 = vmatprep.subr.mxu0 0.0
    %1279 = vmatpush1.msra.mxu0 0.0
    %1280 = vmatprep.mubr.f32.mxu0 0.0
    %1281 = vmatmul.mubr.f32.gmra.mrb[0].mxu0 %v1211
    %v1282 = vpop.f32.mrb[0].mxu0
    %v1283 = vadd.f32 0.0, %v1282
    %v1284 = vpop.f32.mrb[0].mxu0
    %1285 = vmatprep.mubr.f32.mxu0 0.0
    %1286 = vmatmul.mubr.f32.gmra.mrb[0].mxu0 %v1214
    %v1287 = vpop.f32.mrb[0].mxu0
    %v1288 = vadd.f32 0.0, %v1287
    %v1289 = vpop.f32.mrb[0].mxu0
    %1290 = vdwg.mxu0
    %v1292 = vsel %vm247, %v1283, 0
    %v1295 = vsel %vm247, %v1288, 0
    %v1298 = vsel %vm247, %v1202, 0
    %v1301 = vsel %vm247, %v1207, 0
    %1303 = vmatprep.subr.mxu0 0.0
    %1304 = vmatpush1.xpose.msra.mxu0 %v1298
    %1305 = vmatprep.subr.mxu0 0.0
    %1306 = vmatpush1.xpose.msra.mxu0 %v1301
    %1307 = vmatprep.subr.mxu0 0.0
    %1308 = vmatpush1.xpose.msra.mxu0 0.0
    %1309 = vmatprep.subr.mxu0 0.0
    %1310 = vmatpush1.xpose.msra.mxu0 0.0
    %1311 = vmatprep.subr.mxu0 0.0
    %1312 = vmatpush1.xpose.msra.mxu0 0.0
    %1313 = vmatprep.subr.mxu0 0.0
    %1314 = vmatpush1.xpose.msra.mxu0 0.0
    %1315 = vmatprep.subr.mxu0 0.0
    %1316 = vmatpush1.xpose.msra.mxu0 0.0
    %1317 = vmatprep.subr.mxu0 0.0
    %1318 = vmatpush1.xpose.msra.mxu0 0.0
    %1319 = vmatprep.subr.mxu0 0.0
    %1320 = vmatpush1.xpose.msra.mxu0 0.0
    %1321 = vmatprep.subr.mxu0 0.0
    %1322 = vmatpush1.xpose.msra.mxu0 0.0
    %1323 = vmatprep.subr.mxu0 0.0
    %1324 = vmatpush1.xpose.msra.mxu0 0.0
    %1325 = vmatprep.subr.mxu0 0.0
    %1326 = vmatpush1.xpose.msra.mxu0 0.0
    %1327 = vmatprep.subr.mxu0 0.0
    %1328 = vmatpush1.xpose.msra.mxu0 0.0
    %1329 = vmatprep.subr.mxu0 0.0
    %1330 = vmatpush1.xpose.msra.mxu0 0.0
    %1331 = vmatprep.subr.mxu0 0.0
    %1332 = vmatpush1.xpose.msra.mxu0 0.0
    %1333 = vmatprep.subr.mxu0 0.0
    %1334 = vmatpush1.xpose.msra.mxu0 0.0
    %1335 = vmatprep.subr.mxu0 0.0
    %1336 = vmatpush1.xpose.msra.mxu0 0.0
    %1337 = vmatprep.subr.mxu0 0.0
    %1338 = vmatpush1.xpose.msra.mxu0 0.0
    %1339 = vmatprep.subr.mxu0 0.0
    %1340 = vmatpush1.xpose.msra.mxu0 0.0
    %1341 = vmatprep.subr.mxu0 0.0
    %1342 = vmatpush1.xpose.msra.mxu0 0.0
    %1343 = vmatprep.subr.mxu0 0.0
    %1344 = vmatpush1.xpose.msra.mxu0 0.0
    %1345 = vmatprep.subr.mxu0 0.0
    %1346 = vmatpush1.xpose.msra.mxu0 0.0
    %1347 = vmatprep.subr.mxu0 0.0
    %1348 = vmatpush1.xpose.msra.mxu0 0.0
    %1349 = vmatprep.subr.mxu0 0.0
    %1350 = vmatpush1.xpose.msra.mxu0 0.0
    %1351 = vmatprep.subr.mxu0 0.0
    %1352 = vmatpush1.xpose.msra.mxu0 0.0
    %1353 = vmatprep.subr.mxu0 0.0
    %1354 = vmatpush1.xpose.msra.mxu0 0.0
    %1355 = vmatprep.subr.mxu0 0.0
    %1356 = vmatpush1.xpose.msra.mxu0 0.0
    %1357 = vmatprep.subr.mxu0 0.0
    %1358 = vmatpush1.xpose.msra.mxu0 0.0
    %1359 = vmatprep.subr.mxu0 0.0
    %1360 = vmatpush1.xpose.msra.mxu0 0.0
    %1361 = vmatprep.subr.mxu0 0.0
    %1362 = vmatpush1.xpose.msra.mxu0 0.0
    %1363 = vmatprep.subr.mxu0 0.0
    %1364 = vmatpush1.xpose.msra.mxu0 0.0
    %1365 = vmatprep.subr.mxu0 0.0
    %1366 = vmatpush1.xpose.msra.mxu0 0.0
    %1367 = vmatprep.mubr.f32.mxu0 0.0
    %1368 = vmatmul.mubr.f32.gmra.mrb[0].mxu0 %v1292
    %v1369 = vpop.f32.mrb[0].mxu0
    %v1370 = vadd.f32 %v1010, %v1369
    %v1371 = vpop.f32.mrb[0].mxu0
    %1372 = vmatprep.mubr.f32.mxu0 0.0
    %1373 = vmatmul.mubr.f32.gmra.mrb[0].mxu0 %v1295
    %v1374 = vpop.f32.mrb[0].mxu0
    %v1375 = vadd.f32 %v1011, %v1374
    %v1376 = vpop.f32.mrb[0].mxu0
    %1377 = vdwg.mxu0
    %v1378 = vsel %vm566, %v1370, -inf
    %1379 = vmax.xlane.f32.xlu0 %v1378
    %v1380 = vpop.xlane.xlu0 %1379
    %v1381 = vsel %vm566, %v1375, -inf
    %1382 = vmax.xlane.f32.xlu0 %v1381
    %v1383 = vpop.xlane.xlu0 %1382
    %v1384 = vsub.f32 %v1370, %v1380
    %v1385 = vsub.f32 %v1375, %v1383
    %v1386 = vmul.f32 %v1384, 1.442695
    %v1387 = vpow.pop %v1386
    %v1388 = vmul.f32 %v1385, 1.442695
    %v1389 = vpow.pop %v1388
    %v1390 = vsel %vm566, %v1387, 0.0
    %1391 = vadd.xlane.f32.xlu0 %v1390
    %v1392 = vpop.xlane.xlu0 %1391
    %v1393 = vsel %vm566, %v1389, 0.0
    %1394 = vadd.xlane.f32.xlu0 %v1393
    %v1395 = vpop.xlane.xlu0 %1394
    %v1396 = vrcp.pop %v1392
    %v1397 = vrcp.pop %v1395
    %v1398 = vmul.f32 %v1387, %v1396
    %v1399 = vmul.f32 %v1389, %v1397
    %v1401 = vsel %vm566, %v1398, 0
    %v1404 = vsel %vm566, %v1399, 0
    %1406 = vmatprep.subr.mxu0 0.0
    %1407 = vmatpush1.msra.mxu0 %v1127
    %1408 = vmatprep.subr.mxu0 0.0
    %1409 = vmatpush1.msra.mxu0 %v1132
    %1410 = vmatprep.subr.mxu0 0.0
    %1411 = vmatpush1.msra.mxu0 0.0
    %1412 = vmatprep.subr.mxu0 0.0
    %1413 = vmatpush1.msra.mxu0 0.0
    %1414 = vmatprep.subr.mxu0 0.0
    %1415 = vmatpush1.msra.mxu0 0.0
    %1416 = vmatprep.subr.mxu0 0.0
    %1417 = vmatpush1.msra.mxu0 0.0
    %1418 = vmatprep.subr.mxu0 0.0
    %1419 = vmatpush1.msra.mxu0 0.0
    %1420 = vmatprep.subr.mxu0 0.0
    %1421 = vmatpush1.msra.mxu0 0.0
    %1422 = vmatprep.subr.mxu0 0.0
    %1423 = vmatpush1.msra.mxu0 0.0
    %1424 = vmatprep.subr.mxu0 0.0
    %1425 = vmatpush1.msra.mxu0 0.0
    %1426 = vmatprep.subr.mxu0 0.0
    %1427 = vmatpush1.msra.mxu0 0.0
    %1428 = vmatprep.subr.mxu0 0.0
    %1429 = vmatpush1.msra.mxu0 0.0
    %1430 = vmatprep.subr.mxu0 0.0
    %1431 = vmatpush1.msra.mxu0 0.0
    %1432 = vmatprep.subr.mxu0 0.0
    %1433 = vmatpush1.msra.mxu0 0.0
    %1434 = vmatprep.subr.mxu0 0.0
    %1435 = vmatpush1.msra.mxu0 0.0
    %1436 = vmatprep.subr.mxu0 0.0
    %1437 = vmatpush1.msra.mxu0 0.0
    %1438 = vmatprep.subr.mxu0 0.0
    %1439 = vmatpush1.msra.mxu0 0.0
    %1440 = vmatprep.subr.mxu0 0.0
    %1441 = vmatpush1.msra.mxu0 0.0
    %1442 = vmatprep.subr.mxu0 0.0
    %1443 = vmatpush1.msra.mxu0 0.0
    %1444 = vmatprep.subr.mxu0 0.0
    %1445 = vmatpush1.msra.mxu0 0.0
    %1446 = vmatprep.subr.mxu0 0.0
    %1447 = vmatpush1.msra.mxu0 0.0
    %1448 = vmatprep.subr.mxu0 0.0
    %1449 = vmatpush1.msra.mxu0 0.0
    %1450 = vmatprep.subr.mxu0 0.0
    %1451 = vmatpush1.msra.mxu0 0.0
    %1452 = vmatprep.subr.mxu0 0.0
    %1453 = vmatpush1.msra.mxu0 0.0
    %1454 = vmatprep.subr.mxu0 0.0
    %1455 = vmatpush1.msra.mxu0 0.0
    %1456 = vmatprep.subr.mxu0 0.0
    %1457 = vmatpush1.msra.mxu0 0.0
    %1458 = vmatprep.subr.mxu0 0.0
    %1459 = vmatpush1.msra.mxu0 0.0
    %1460 = vmatprep.subr.mxu0 0.0
    %1461 = vmatpush1.msra.mxu0 0.0
    %1462 = vmatprep.subr.mxu0 0.0
    %1463 = vmatpush1.msra.mxu0 0.0
    %1464 = vmatprep.subr.mxu0 0.0
    %1465 = vmatpush1.msra.mxu0 0.0
    %1466 = vmatprep.subr.mxu0 0.0
    %1467 = vmatpush1.msra.mxu0 0.0
    %1468 = vmatprep.subr.mxu0 0.0
    %1469 = vmatpush1.msra.mxu0 0.0
    %1470 = vmatprep.mubr.f32.mxu0 0.0
    %1471 = vmatmul.mubr.f32.gmra.mrb[0].mxu0 %v1401
    %v1472 = vpop.f32.mrb[0].mxu0
    %v1473 = vadd.f32 0.0, %v1472
    %v1474 = vpop.f32.mrb[0].mxu0
    %1475 = vmatprep.mubr.f32.mxu0 0.0
    %1476 = vmatmul.mubr.f32.gmra.mrb[0].mxu0 %v1404
    %v1477 = vpop.f32.mrb[0].mxu0
    %v1478 = vadd.f32 0.0, %v1477
    %v1479 = vpop.f32.mrb[0].mxu0
    %1480 = vdwg.mxu0
    %v1481 = vlaneseq
    %v1482 = vshrl.u32 %v1481, 7
    %v1483 = vsub.s32 6, %v1482
    %v1484 = vrot.slane %v203, %v1483
    %v1486 = vsel %vm247, %v1473, 0
    %v1489 = vsel %vm247, %v1478, 0
    %1491 = vmatprep.subr.mxu0 0.0
    %1492 = vmatpush1.msra.mxu0 %v1028
    %1493 = vmatprep.subr.mxu0 0.0
    %1494 = vmatpush1.msra.mxu0 %v1029
    %1495 = vmatprep.subr.mxu0 0.0
    %1496 = vmatpush1.msra.mxu0 %v1030
    %1497 = vmatprep.subr.mxu0 0.0
    %1498 = vmatpush1.msra.mxu0 %v1031
    %1499 = vmatprep.subr.mxu0 0.0
    %1500 = vmatpush1.msra.mxu0 0.0
    %1501 = vmatprep.subr.mxu0 0.0
    %1502 = vmatpush1.msra.mxu0 0.0
    %1503 = vmatprep.subr.mxu0 0.0
    %1504 = vmatpush1.msra.mxu0 0.0
    %1505 = vmatprep.subr.mxu0 0.0
    %1506 = vmatpush1.msra.mxu0 0.0
    %1507 = vmatprep.subr.mxu0 0.0
    %1508 = vmatpush1.msra.mxu0 0.0
    %1509 = vmatprep.subr.mxu0 0.0
    %1510 = vmatpush1.msra.mxu0 0.0
    %1511 = vmatprep.subr.mxu0 0.0
    %1512 = vmatpush1.msra.mxu0 0.0
    %1513 = vmatprep.subr.mxu0 0.0
    %1514 = vmatpush1.msra.mxu0 0.0
    %1515 = vmatprep.subr.mxu0 0.0
    %1516 = vmatpush1.msra.mxu0 0.0
    %1517 = vmatprep.subr.mxu0 0.0
    %1518 = vmatpush1.msra.mxu0 0.0
    %1519 = vmatprep.subr.mxu0 0.0
    %1520 = vmatpush1.msra.mxu0 0.0
    %1521 = vmatprep.subr.mxu0 0.0
    %1522 = vmatpush1.msra.mxu0 0.0
    %1523 = vmatprep.subr.mxu0 0.0
    %1524 = vmatpush1.msra.mxu0 0.0
    %1525 = vmatprep.subr.mxu0 0.0
    %1526 = vmatpush1.msra.mxu0 0.0
    %1527 = vmatprep.subr.mxu0 0.0
    %1528 = vmatpush1.msra.mxu0 0.0
    %1529 = vmatprep.subr.mxu0 0.0
    %1530 = vmatpush1.msra.mxu0 0.0
    %1531 = vmatprep.subr.mxu0 0.0
    %1532 = vmatpush1.msra.mxu0 0.0
    %1533 = vmatprep.subr.mxu0 0.0
    %1534 = vmatpush1.msra.mxu0 0.0
    %1535 = vmatprep.subr.mxu0 0.0
    %1536 = vmatpush1.msra.mxu0 0.0
    %1537 = vmatprep.subr.mxu0 0.0
    %1538 = vmatpush1.msra.mxu0 0.0
    %1539 = vmatprep.subr.mxu0 0.0
    %1540 = vmatpush1.msra.mxu0 0.0
    %1541 = vmatprep.subr.mxu0 0.0
    %1542 = vmatpush1.msra.mxu0 0.0
    %1543 = vmatprep.subr.mxu0 0.0
    %1544 = vmatpush1.msra.mxu0 0.0
    %1545 = vmatprep.subr.mxu0 0.0
    %1546 = vmatpush1.msra.mxu0 0.0
    %1547 = vmatprep.subr.mxu0 0.0
    %1548 = vmatpush1.msra.mxu0 0.0
    %1549 = vmatprep.subr.mxu0 0.0
    %1550 = vmatpush1.msra.mxu0 0.0
    %1551 = vmatprep.subr.mxu0 0.0
    %1552 = vmatpush1.msra.mxu0 0.0
    %1553 = vmatprep.subr.mxu0 0.0
    %1554 = vmatpush1.msra.mxu0 0.0
    %1555 = vmatprep.mubr.f32.mxu0 0.0
    %1556 = vmatmul.mubr.f32.gmra.mrb[0].mxu0 %v1486
    %v1557 = vpop.f32.mrb[0].mxu0
    %v1558 = vadd.f32 %v1484, %v1557
    %v1559 = vpop.f32.mrb[0].mxu0
    %1560 = vmatprep.mubr.f32.mxu0 0.0
    %1561 = vmatmul.mubr.f32.gmra.mrb[0].mxu0 %v1489
    %v1562 = vpop.f32.mrb[0].mxu0
    %v1563 = vadd.f32 %v1484, %v1562
    %v1564 = vpop.f32.mrb[0].mxu0
    %1565 = vdwg.mxu0
    %v1566 = vadd.f32 %v1558, %v201
    %v1567 = vadd.f32 %v1563, %v202
    %v1568 = vsel %vm247, %v1566, 0.0
    %1569 = vadd.xlane.f32.xlu0 %v1568
    %v1570 = vpop.xlane.xlu0 %1569
    %v1571 = vsel %vm247, %v1567, 0.0
    %1572 = vadd.xlane.f32.xlu0 %v1571
    %v1573 = vpop.xlane.xlu0 %1572
    %v1574 = vmul.f32 %v1570, %v763
    %v1575 = vmul.f32 %v1573, %v763
    %v1576 = vmul.f32 %v1566, %v1566
    %v1577 = vmul.f32 %v1567, %v1567
    %v1578 = vsel %vm247, %v1576, 0.0
    %1579 = vadd.xlane.f32.xlu0 %v1578
    %v1580 = vpop.xlane.xlu0 %1579
    %v1581 = vsel %vm247, %v1577, 0.0
    %1582 = vadd.xlane.f32.xlu0 %v1581
    %v1583 = vpop.xlane.xlu0 %1582
    %v1584 = vmul.f32 %v1580, %v763
    %v1585 = vmul.f32 %v1583, %v763
    %v1586 = vmul.f32 %v1574, %v1574
    %v1587 = vmul.f32 %v1575, %v1575
    %v1588 = vsub.f32 %v1584, %v1586
    %v1589 = vsub.f32 %v1585, %v1587
    %v1590 = vsub.f32 %v1566, %v1574
    %v1591 = vsub.f32 %v1567, %v1575
    %v1592 = vadd.f32 %v1588, 1e-05
    %v1593 = vadd.f32 %v1589, 1e-05
    %v1594 = vrsqrt.pop %v1592
    %v1595 = vrsqrt.pop %v1593
    %v1596 = vmul.f32 %v1590, %v1594
    %v1597 = vmul.f32 %v1591, %v1595
    %v1598 = vlaneseq
    %v1599 = vshrl.u32 %v1598, 7
    %v1600 = vsub.s32 0, %v1599
    %v1601 = vrot.slane %v204, %v1600
    %v1602 = vmul.f32 %v1596, %v1601
    %v1603 = vmul.f32 %v1597, %v1601
    %v1604 = vlaneseq
    %v1605 = vshrl.u32 %v1604, 7
    %v1606 = vsub.s32 1, %v1605
    %v1607 = vrot.slane %v204, %v1606
    %v1608 = vadd.f32 %v1602, %v1607
    %v1609 = vadd.f32 %v1603, %v1607
    %v1610 = vlaneseq
    %v1611 = vshrl.u32 %v1610, 7
    %v1612 = vsub.s32 1, %v1611
    %v1613 = vrot.slane %v205, %v1612
    %v1615 = vsel %vm247, %v1608, 0
    %v1618 = vsel %vm247, %v1609, 0
    %1620 = vmatprep.subr.mxu0 0.0
    %1621 = vmatpush1.msra.mxu0 %v1033
    %1622 = vmatprep.subr.mxu0 0.0
    %1623 = vmatpush1.msra.mxu0 %v1034
    %1624 = vmatprep.subr.mxu0 0.0
    %1625 = vmatpush1.msra.mxu0 %v1035
    %1626 = vmatprep.subr.mxu0 0.0
    %1627 = vmatpush1.msra.mxu0 %v1036
    %1628 = vmatprep.subr.mxu0 0.0
    %1629 = vmatpush1.msra.mxu0 0.0
    %1630 = vmatprep.subr.mxu0 0.0
    %1631 = vmatpush1.msra.mxu0 0.0
    %1632 = vmatprep.subr.mxu0 0.0
    %1633 = vmatpush1.msra.mxu0 0.0
    %1634 = vmatprep.subr.mxu0 0.0
    %1635 = vmatpush1.msra.mxu0 0.0
    %1636 = vmatprep.subr.mxu0 0.0
    %1637 = vmatpush1.msra.mxu0 0.0
    %1638 = vmatprep.subr.mxu0 0.0
    %1639 = vmatpush1.msra.mxu0 0.0
    %1640 = vmatprep.subr.mxu0 0.0
    %1641 = vmatpush1.msra.mxu0 0.0
    %1642 = vmatprep.subr.mxu0 0.0
    %1643 = vmatpush1.msra.mxu0 0.0
    %1644 = vmatprep.subr.mxu0 0.0
    %1645 = vmatpush1.msra.mxu0 0.0
    %1646 = vmatprep.subr.mxu0 0.0
    %1647 = vmatpush1.msra.mxu0 0.0
    %1648 = vmatprep.subr.mxu0 0.0
    %1649 = vmatpush1.msra.mxu0 0.0
    %1650 = vmatprep.subr.mxu0 0.0
    %1651 = vmatpush1.msra.mxu0 0.0
    %1652 = vmatprep.subr.mxu0 0.0
    %1653 = vmatpush1.msra.mxu0 0.0
    %1654 = vmatprep.subr.mxu0 0.0
    %1655 = vmatpush1.msra.mxu0 0.0
    %1656 = vmatprep.subr.mxu0 0.0
    %1657 = vmatpush1.msra.mxu0 0.0
    %1658 = vmatprep.subr.mxu0 0.0
    %1659 = vmatpush1.msra.mxu0 0.0
    %1660 = vmatprep.subr.mxu0 0.0
    %1661 = vmatpush1.msra.mxu0 0.0
    %1662 = vmatprep.subr.mxu0 0.0
    %1663 = vmatpush1.msra.mxu0 0.0
    %1664 = vmatprep.subr.mxu0 0.0
    %1665 = vmatpush1.msra.mxu0 0.0
    %1666 = vmatprep.subr.mxu0 0.0
    %1667 = vmatpush1.msra.mxu0 0.0
    %1668 = vmatprep.subr.mxu0 0.0
    %1669 = vmatpush1.msra.mxu0 0.0
    %1670 = vmatprep.subr.mxu0 0.0
    %1671 = vmatpush1.msra.mxu0 0.0
    %1672 = vmatprep.subr.mxu0 0.0
    %1673 = vmatpush1.msra.mxu0 0.0
    %1674 = vmatprep.subr.mxu0 0.0
    %1675 = vmatpush1.msra.mxu0 0.0
    %1676 = vmatprep.subr.mxu0 0.0
    %1677 = vmatpush1.msra.mxu0 0.0
    %1678 = vmatprep.subr.mxu0 0.0
    %1679 = vmatpush1.msra.mxu0 0.0
    %1680 = vmatprep.subr.mxu0 0.0
    %1681 = vmatpush1.msra.mxu0 0.0
    %1682 = vmatprep.subr.mxu0 0.0
    %1683 = vmatpush1.msra.mxu0 0.0
    %1684 = vmatprep.mubr.f32.mxu0 0.0
    %1685 = vmatmul.mubr.f32.gmra.mrb[0].mxu0 %v1615
    %v1686 = vpop.f32.mrb[0].mxu0
    %v1687 = vadd.f32 %v1613, %v1686
    %v1688 = vpop.f32.mrb[0].mxu0
    %1689 = vmatprep.mubr.f32.mxu0 0.0
    %1690 = vmatmul.mubr.f32.gmra.mrb[0].mxu0 %v1618
    %v1691 = vpop.f32.mrb[0].mxu0
    %v1692 = vadd.f32 %v1613, %v1691
    %v1693 = vpop.f32.mrb[0].mxu0
    %1694 = vdwg.mxu0
    %v1695 = vmax.f32 %v1687, 0.0
    %v1696 = vmax.f32 %v1692, 0.0
    %v1697 = vlaneseq
    %v1698 = vshrl.u32 %v1697, 7
    %v1699 = vsub.s32 7, %v1698
    %v1700 = vrot.slane %v203, %v1699
    %1701 = vmatprep.subr.mxu0 0.0
    %1702 = vmatpush1.msra.mxu0 %v1038
    %1703 = vmatprep.subr.mxu0 0.0
    %1704 = vmatpush1.msra.mxu0 %v1039
    %1705 = vmatprep.subr.mxu0 0.0
    %1706 = vmatpush1.msra.mxu0 %v1040
    %1707 = vmatprep.subr.mxu0 0.0
    %1708 = vmatpush1.msra.mxu0 %v1041
    %1709 = vmatprep.subr.mxu0 0.0
    %1710 = vmatpush1.msra.mxu0 %v1042
    %1711 = vmatprep.subr.mxu0 0.0
    %1712 = vmatpush1.msra.mxu0 %v1043
    %1713 = vmatprep.subr.mxu0 0.0
    %1714 = vmatpush1.msra.mxu0 %v1044
    %1715 = vmatprep.subr.mxu0 0.0
    %1716 = vmatpush1.msra.mxu0 %v1045
    %1717 = vmatprep.subr.mxu0 0.0
    %1718 = vmatpush1.msra.mxu0 %v1046
    %1719 = vmatprep.subr.mxu0 0.0
    %1720 = vmatpush1.msra.mxu0 %v1047
    %1721 = vmatprep.subr.mxu0 0.0
    %1722 = vmatpush1.msra.mxu0 %v1048
    %1723 = vmatprep.subr.mxu0 0.0
    %1724 = vmatpush1.msra.mxu0 %v1049
    %1725 = vmatprep.subr.mxu0 0.0
    %1726 = vmatpush1.msra.mxu0 %v1050
    %1727 = vmatprep.subr.mxu0 0.0
    %1728 = vmatpush1.msra.mxu0 %v1051
    %1729 = vmatprep.subr.mxu0 0.0
    %1730 = vmatpush1.msra.mxu0 %v1052
    %1731 = vmatprep.subr.mxu0 0.0
    %1732 = vmatpush1.msra.mxu0 %v1053
    %1733 = vmatprep.subr.mxu0 0.0
    %1734 = vmatpush1.msra.mxu0 0.0
    %1735 = vmatprep.subr.mxu0 0.0
    %1736 = vmatpush1.msra.mxu0 0.0
    %1737 = vmatprep.subr.mxu0 0.0
    %1738 = vmatpush1.msra.mxu0 0.0
    %1739 = vmatprep.subr.mxu0 0.0
    %1740 = vmatpush1.msra.mxu0 0.0
    %1741 = vmatprep.subr.mxu0 0.0
    %1742 = vmatpush1.msra.mxu0 0.0
    %1743 = vmatprep.subr.mxu0 0.0
    %1744 = vmatpush1.msra.mxu0 0.0
    %1745 = vmatprep.subr.mxu0 0.0
    %1746 = vmatpush1.msra.mxu0 0.0
    %1747 = vmatprep.subr.mxu0 0.0
    %1748 = vmatpush1.msra.mxu0 0.0
    %1749 = vmatprep.subr.mxu0 0.0
    %1750 = vmatpush1.msra.mxu0 0.0
    %1751 = vmatprep.subr.mxu0 0.0
    %1752 = vmatpush1.msra.mxu0 0.0
    %1753 = vmatprep.subr.mxu0 0.0
    %1754 = vmatpush1.msra.mxu0 0.0
    %1755 = vmatprep.subr.mxu0 0.0
    %1756 = vmatpush1.msra.mxu0 0.0
    %1757 = vmatprep.subr.mxu0 0.0
    %1758 = vmatpush1.msra.mxu0 0.0
    %1759 = vmatprep.subr.mxu0 0.0
    %1760 = vmatpush1.msra.mxu0 0.0
    %1761 = vmatprep.subr.mxu0 0.0
    %1762 = vmatpush1.msra.mxu0 0.0
    %1763 = vmatprep.subr.mxu0 0.0
    %1764 = vmatpush1.msra.mxu0 0.0
    %1765 = vmatprep.mubr.f32.mxu0 0.0
    %1766 = vmatmul.mubr.f32.gmra.mrb[0].mxu0 %v1695
    %v1767 = vpop.f32.mrb[0].mxu0
    %v1768 = vadd.f32 %v1700, %v1767
    %v1769 = vpop.f32.mrb[0].mxu0
    %1770 = vmatprep.mubr.f32.mxu0 0.0
    %1771 = vmatmul.mubr.f32.gmra.mrb[0].mxu0 %v1696
    %v1772 = vpop.f32.mrb[0].mxu0
    %v1773 = vadd.f32 %v1700, %v1772
    %v1774 = vpop.f32.mrb[0].mxu0
    %1775 = vdwg.mxu0
    %v1776 = vadd.f32 %v1768, %v1608
    %v1777 = vadd.f32 %v1773, %v1609
    %v1778 = vsel %vm247, %v1776, 0.0
    %1779 = vadd.xlane.f32.xlu0 %v1778
    %v1780 = vpop.xlane.xlu0 %1779
    %v1781 = vsel %vm247, %v1777, 0.0
    %1782 = vadd.xlane.f32.xlu0 %v1781
    %v1783 = vpop.xlane.xlu0 %1782
    %v1784 = vmul.f32 %v1780, %v763
    %v1785 = vmul.f32 %v1783, %v763
    %v1786 = vmul.f32 %v1776, %v1776
    %v1787 = vmul.f32 %v1777, %v1777
    %v1788 = vsel %vm247, %v1786, 0.0
    %1789 = vadd.xlane.f32.xlu0 %v1788
    %v1790 = vpop.xlane.xlu0 %1789
    %v1791 = vsel %vm247, %v1787, 0.0
    %1792 = vadd.xlane.f32.xlu0 %v1791
    %v1793 = vpop.xlane.xlu0 %1792
    %v1794 = vmul.f32 %v1790, %v763
    %v1795 = vmul.f32 %v1793, %v763
    %v1796 = vmul.f32 %v1784, %v1784
    %v1797 = vmul.f32 %v1785, %v1785
    %v1798 = vsub.f32 %v1794, %v1796
    %v1799 = vsub.f32 %v1795, %v1797
    %v1800 = vsub.f32 %v1776, %v1784
    %v1801 = vsub.f32 %v1777, %v1785
    %v1802 = vadd.f32 %v1798, 1e-05
    %v1803 = vadd.f32 %v1799, 1e-05
    %v1804 = vrsqrt.pop %v1802
    %v1805 = vrsqrt.pop %v1803
    %v1806 = vmul.f32 %v1800, %v1804
    %v1807 = vmul.f32 %v1801, %v1805
    %v1808 = vlaneseq
    %v1809 = vshrl.u32 %v1808, 7
    %v1810 = vsub.s32 2, %v1809
    %v1811 = vrot.slane %v204, %v1810
    %v1812 = vmul.f32 %v1806, %v1811
    %v1813 = vmul.f32 %v1807, %v1811
    %v1814 = vlaneseq
    %v1815 = vshrl.u32 %v1814, 7
    %v1816 = vsub.s32 3, %v1815
    %v1817 = vrot.slane %v204, %v1816
    %v1818 = vadd.f32 %v1812, %v1817
    %v1819 = vadd.f32 %v1813, %v1817
    %v1820 = vld [vmem:[%s9] sm:$0xff]
    %v1821 = vld [vmem:[%s9 + $0x8] sm:$0xff]
    %v1822 = vld [vmem:[%s9 + $0x10] sm:$0xff]
    %v1823 = vld [vmem:[%s9 + $0x18] sm:$0xff]
    %v1824 = vld [vmem:[%s12] sm:$0x1]
    %v1826 = vlaneseq
    %v1827 = vshrl.u32 %v1826, 7
    %v1828 = vsub.s32 0, %v1827
    %v1829 = vrot.slane %v1824, %v1828
    %v1832 = vsel %vm247, %v1818, 0
    %v1835 = vsel %vm247, %v1819, 0
    %1837 = vmatprep.subr.mxu0 0.0
    %1838 = vmatpush1.msra.mxu0 %v1820
    %1839 = vmatprep.subr.mxu0 0.0
    %1840 = vmatpush1.msra.mxu0 %v1821
    %1841 = vmatprep.subr.mxu0 0.0
    %1842 = vmatpush1.msra.mxu0 %v1822
    %1843 = vmatprep.subr.mxu0 0.0
    %1844 = vmatpush1.msra.mxu0 %v1823
    %1845 = vmatprep.subr.mxu0 0.0
    %1846 = vmatpush1.msra.mxu0 0.0
    %1847 = vmatprep.subr.mxu0 0.0
    %1848 = vmatpush1.msra.mxu0 0.0
    %1849 = vmatprep.subr.mxu0 0.0
    %1850 = vmatpush1.msra.mxu0 0.0
    %1851 = vmatprep.subr.mxu0 0.0
    %1852 = vmatpush1.msra.mxu0 0.0
    %1853 = vmatprep.subr.mxu0 0.0
    %1854 = vmatpush1.msra.mxu0 0.0
    %1855 = vmatprep.subr.mxu0 0.0
    %1856 = vmatpush1.msra.mxu0 0.0
    %1857 = vmatprep.subr.mxu0 0.0
    %1858 = vmatpush1.msra.mxu0 0.0
    %1859 = vmatprep.subr.mxu0 0.0
    %1860 = vmatpush1.msra.mxu0 0.0
    %1861 = vmatprep.subr.mxu0 0.0
    %1862 = vmatpush1.msra.mxu0 0.0
    %1863 = vmatprep.subr.mxu0 0.0
    %1864 = vmatpush1.msra.mxu0 0.0
    %1865 = vmatprep.subr.mxu0 0.0
    %1866 = vmatpush1.msra.mxu0 0.0
    %1867 = vmatprep.subr.mxu0 0.0
    %1868 = vmatpush1.msra.mxu0 0.0
    %1869 = vmatprep.subr.mxu0 0.0
    %1870 = vmatpush1.msra.mxu0 0.0
    %1871 = vmatprep.subr.mxu0 0.0
    %1872 = vmatpush1.msra.mxu0 0.0
    %1873 = vmatprep.subr.mxu0 0.0
    %1874 = vmatpush1.msra.mxu0 0.0
    %1875 = vmatprep.subr.mxu0 0.0
    %1876 = vmatpush1.msra.mxu0 0.0
    %1877 = vmatprep.subr.mxu0 0.0
    %1878 = vmatpush1.msra.mxu0 0.0
    %1879 = vmatprep.subr.mxu0 0.0
    %1880 = vmatpush1.msra.mxu0 0.0
    %1881 = vmatprep.subr.mxu0 0.0
    %1882 = vmatpush1.msra.mxu0 0.0
    %1883 = vmatprep.subr.mxu0 0.0
    %1884 = vmatpush1.msra.mxu0 0.0
    %1885 = vmatprep.subr.mxu0 0.0
    %1886 = vmatpush1.msra.mxu0 0.0
    %1887 = vmatprep.subr.mxu0 0.0
    %1888 = vmatpush1.msra.mxu0 0.0
    %1889 = vmatprep.subr.mxu0 0.0
    %1890 = vmatpush1.msra.mxu0 0.0
    %1891 = vmatprep.subr.mxu0 0.0
    %1892 = vmatpush1.msra.mxu0 0.0
    %1893 = vmatprep.subr.mxu0 0.0
    %1894 = vmatpush1.msra.mxu0 0.0
    %1895 = vmatprep.subr.mxu0 0.0
    %1896 = vmatpush1.msra.mxu0 0.0
    %1897 = vmatprep.subr.mxu0 0.0
    %1898 = vmatpush1.msra.mxu0 0.0
    %1899 = vmatprep.subr.mxu0 0.0
    %1900 = vmatpush1.msra.mxu0 0.0
    %1901 = vmatprep.mubr.f32.mxu0 0.0
    %1902 = vmatmul.mubr.f32.gmra.mrb[0].mxu0 %v1832
    %v1903 = vpop.f32.mrb[0].mxu0
    %v1904 = vadd.f32 %v1829, %v1903
    %v1905 = vpop.f32.mrb[0].mxu0
    %1906 = vmatprep.mubr.f32.mxu0 0.0
    %1907 = vmatmul.mubr.f32.gmra.mrb[0].mxu0 %v1835
    %v1908 = vpop.f32.mrb[0].mxu0
    %v1909 = vadd.f32 %v1829, %v1908
    %v1910 = vpop.f32.mrb[0].mxu0
    %1911 = vdwg.mxu0
    %1912 = vst [vmem:[#allocation9] sm:$0xff] %v1904
    %1913 = vst [vmem:[#allocation9 + $0x8] sm:$0xff] %v1909
    // Predicated region
    $region62: #{simple_transformer_forward.1} parent=1 // pred_check
      _
    $region63: #{simple_transformer_forward.1} parent=1 // pred_check_branch
      %1915 = sbr.rel (0) target = $region65
    $region64: #{simple_transformer_forward.1} parent=1 // pred_region
      %s1917 = ssub.s32 256, 256
      %1918 = vsyncadd [#allocation5], %s1917
      %s1919 = sshll.u32 [#allocation9], 4
      %s1920 = int_to_ptr.vmem [resolvable:$true] %s1919
      %1925 = dma.vmem_to_hbm [thread:$0]  %s1920, 256, %s13, [#allocation5], 128, 128, 8
    $region65: #{simple_transformer_forward.1} parent=1 // pred_fallthru
      _
    // Predicated region
    $region66: #{simple_transformer_forward.1} parent=1 // pred_check
      _
    $region67: #{simple_transformer_forward.1} parent=1 // pred_check_branch
      %1927 = sbr.rel (0) target = $region69
    $region68: #{simple_transformer_forward.1} parent=1 // pred_region
      %1928 = dma.done [#allocation5], 256
    $region69: #{simple_transformer_forward.1} parent=1 // pred_fallthru
      _
    %1929 = vsyncpa [#allocation5], 1
    %1930 = vsyncpa [#allocation6], 1
    %1931 = vsyncpa [#allocation8], 1

</llo_original>
